<compile_context>
chip_gen: v7x
topology: tpu7x:2x2x1
jax: 0.10.0
libtpu: 0.0.40
codegen_flags: <defaults>
</compile_context>

<pallas_src>
import functools

import jax
import jax.numpy as jnp
from jax import lax
from jax.experimental import pallas as pl
from jax.experimental.pallas import tpu as pltpu


def _round_up(x, m):
    return (x + m - 1) // m * m


def lstm_fc_kernel(x_ref, h0_ref, c0_ref, wih_ref, whh_ref, b_ref,
                   wfc_ref, bfc_ref, out_ref, hn_ref, cn_ref, xp_ref,
                   *, seq_len, batch_p, hidden, input_is_scalar):
    """Full forward in VMEM.

    x_ref  : (S*Bp, I)  time-major input, batch padded to Bp, flattened
    h0_ref : (Bp, H)    initial hidden (padded)
    c0_ref : (Bp, H)    initial cell (padded)
    wih_ref: (I, 4H)    input->gate weights, order (i,f,o,g), 0.5 folded in i/f/o
    whh_ref: (H, 4H)    hidden->gate weights, order (i,f,o,g), bf16, 0.5 folded
    b_ref  : (1, 4H)    combined gate bias (b_ih+b_hh), same order / folding
    wfc_ref: (H, Op)    fc weight (transposed, lane-padded)
    bfc_ref: (1, Op)    fc bias (lane-padded)
    out_ref: (Bp, Op)   fc(h_last)
    hn_ref : (Bp, H)    final hidden
    cn_ref : (Bp, H)    final cell
    xp_ref : (S*Bp, 4H) VMEM scratch for the hoisted input projection
    """
    S, Bp, H = seq_len, batch_p, hidden

    # ---- Hoisted, h-independent input projection.  Written to VMEM scratch so
    # its ~32 vregs are not live across the unrolled recurrence (spill fix).
    if input_is_scalar:
        # I == 1: (N,1) * (1,4H) broadcast on the VPU — no degenerate K=1 MXU pass.
        xp_ref[...] = x_ref[...] * wih_ref[...] + b_ref[...]
    else:
        xp_ref[...] = (jnp.dot(x_ref[...], wih_ref[...],
                               preferred_element_type=jnp.float32)
                       + b_ref[...])

    h = h0_ref[...].astype(jnp.bfloat16)      # bf16 carry == next-step MXU LHS
    c = c0_ref[...]                           # f32 cell carry

    # Fully unrolled static recurrence (S small & compile-time constant).
    # Per-step ref reads (xp slice, whh) keep register pressure low while the
    # scheduler interleaves MXU / EUP / VPU work of adjacent steps.
    for t in range(S):
        xp_t = xp_ref[pl.ds(t * Bp, Bp), :]                       # (Bp, 4H) f32
        gates = xp_t + jnp.dot(h, whh_ref[...],
                               preferred_element_type=jnp.float32)
        # Gate order (i, f, o, g); 0.5 pre-folded into i/f/o weights+bias:
        #   sigmoid(z) = 0.5*tanh(0.5*z) + 0.5  ->  0.5*tanh(gates_ifo) + 0.5
        # Nonlinearities in bf16 (EUP bf16 on v6e/v7x); carries: c f32, h bf16.
        sig = jnp.tanh(gates[:, :3 * H].astype(jnp.bfloat16)) * 0.5 + 0.5
        i_g = sig[:, 0 * H:1 * H]
        f_g = sig[:, 1 * H:2 * H]
        o_g = sig[:, 2 * H:3 * H]
        g_g = jnp.tanh(gates[:, 3 * H:4 * H].astype(jnp.bfloat16))
        c = f_g.astype(jnp.float32) * c + (i_g * g_g).astype(jnp.float32)
        h = o_g * jnp.tanh(c.astype(jnp.bfloat16))                # (Bp, H) bf16

    hn_ref[...] = h.astype(jnp.float32)
    cn_ref[...] = c
    out_ref[...] = (jnp.dot(h.astype(jnp.float32), wfc_ref[...],
                            preferred_element_type=jnp.float32)
                    + bfc_ref[...])


def prepare_params(params):
    """One-time weight prep: gate permutation, 0.5 folding, transposes, casts,
    lane-padding of the fc output.  Keep the result and reuse across calls."""
    H = params["w_hh"].shape[1]
    O = params["fc_w"].shape[0]
    Op = _round_up(max(O, 128), 128)

    # PyTorch gate order (i, f, g, o) -> (i, f, o, g): sigmoid gates contiguous.
    perm = jnp.concatenate([jnp.arange(0, 2 * H),
                            jnp.arange(3 * H, 4 * H),
                            jnp.arange(2 * H, 3 * H)])
    w_ih = params["w_ih"][perm].astype(jnp.float32)               # (4H, I)
    w_hh = params["w_hh"][perm].astype(jnp.float32)               # (4H, H)
    bias = (params["b_ih"] + params["b_hh"])[perm].astype(jnp.float32)

    # Fold the inner 0.5 of sigmoid(z)=0.5*tanh(0.5 z)+0.5 into i/f/o rows
    # (exact: 0.5 is a power of two, also exact after the bf16 cast of W_hh).
    scale = jnp.concatenate([jnp.full((3 * H,), 0.5, jnp.float32),
                             jnp.ones((H,), jnp.float32)])
    w_ih = w_ih * scale[:, None]
    w_hh = w_hh * scale[:, None]
    bias = bias * scale

    prep = {
        "wih_t": w_ih.T,                                          # (I, 4H) f32
        "whh_t": w_hh.T.astype(jnp.bfloat16),                     # (H, 4H) bf16
        "b_row": bias.reshape(1, 4 * H),                          # (1, 4H) f32
        "wfc_t": jnp.zeros((H, Op), jnp.float32).at[:, :O].set(
            params["fc_w"].T.astype(jnp.float32)),                # (H, Op)
        "bfc": jnp.zeros((1, Op), jnp.float32).at[:, :O].set(
            params["fc_b"].astype(jnp.float32).reshape(1, O)),    # (1, Op)
    }
    return jax.tree_util.tree_map(jnp.asarray, prep), O


@functools.partial(jax.jit, static_argnames=("out_features",))
def lstm_model_forward(x, hidden, prep, *, out_features):
    """Equivalent of LSTMModel.forward(x, hidden) -> (logits, (h_n, c_n))."""
    h0, c0 = hidden                        # each (num_layers=1, B, H)
    B, S, I = x.shape
    H = prep["whh_t"].shape[0]
    Op = prep["wfc_t"].shape[1]

    Bp = _round_up(max(B, 8), 8)           # sublane-full batch tiles (f32: 8)

    # Time-major, batch padded to Bp, flattened: the input projection becomes a
    # single (S*Bp, I) op inside the kernel.
    x_tm = jnp.transpose(x.astype(jnp.float32), (1, 0, 2))        # (S, B, I)
    x_tm = jnp.pad(x_tm, ((0, 0), (0, Bp - B), (0, 0)))           # (S, Bp, I)
    x_flat = x_tm.reshape(S * Bp, I)

    h0_p = jnp.pad(h0[0].astype(jnp.float32), ((0, Bp - B), (0, 0)))
    c0_p = jnp.pad(c0[0].astype(jnp.float32), ((0, Bp - B), (0, 0)))

    vmem = pl.BlockSpec(memory_space=pltpu.MemorySpace.VMEM)
    kernel = functools.partial(lstm_fc_kernel, seq_len=S, batch_p=Bp, hidden=H,
                               input_is_scalar=(I == 1))

    out, hn, cn = pl.pallas_call(
        kernel,
        out_shape=(
            jax.ShapeDtypeStruct((Bp, Op), jnp.float32),
            jax.ShapeDtypeStruct((Bp, H), jnp.float32),
            jax.ShapeDtypeStruct((Bp, H), jnp.float32),
        ),
        in_specs=[vmem] * 8,
        out_specs=(vmem, vmem, vmem),
        scratch_shapes=[pltpu.VMEM((S * Bp, 4 * H), jnp.float32)],
    )(x_flat, h0_p, c0_p, prep["wih_t"], prep["whh_t"], prep["b_row"],
      prep["wfc_t"], prep["bfc"])

    logits = out[:B, :out_features]
    return logits, (hn[:B][None], cn[:B][None])


def ref_forward(x, hidden, params):
    """Pure-JAX reference of the same forward (for validation)."""
    h, c = hidden[0][0], hidden[1][0]
    w_ih, w_hh = params["w_ih"], params["w_hh"]
    b = params["b_ih"] + params["b_hh"]
    H = w_hh.shape[1]

    def step(carry, x_t):
        h, c = carry
        gates = x_t @ w_ih.T + h @ w_hh.T + b
        i_g = jax.nn.sigmoid(gates[:, 0 * H:1 * H])
        f_g = jax.nn.sigmoid(gates[:, 1 * H:2 * H])
        g_g = jnp.tanh(gates[:, 2 * H:3 * H])
        o_g = jax.nn.sigmoid(gates[:, 3 * H:4 * H])
        c = f_g * c + i_g * g_g
        h = o_g * jnp.tanh(c)
        return (h, c), None

    (h, c), _ = lax.scan(step, (h, c), jnp.transpose(x, (1, 0, 2)))
    out = h @ params["fc_w"].T + params["fc_b"]
    return out, (h[None], c[None])


def init_params(key, input_size, hidden_size, output_size):
    """Deterministic init mimicking PyTorch's U(-1/sqrt(H), 1/sqrt(H))."""
    k = 1.0 / jnp.sqrt(jnp.float32(hidden_size))
    keys = jax.random.split(key, 6)
    u = lambda kk, shape: jax.random.uniform(kk, shape, jnp.float32, -k, k)
    return {
        "w_ih": u(keys[0], (4 * hidden_size, input_size)),
        "w_hh": u(keys[1], (4 * hidden_size, hidden_size)),
        "b_ih": u(keys[2], (4 * hidden_size,)),
        "b_hh": u(keys[3], (4 * hidden_size,)),
        "fc_w": u(keys[4], (output_size, hidden_size)),
        "fc_b": u(keys[5], (output_size,)),
    }


if __name__ == "__main__":
    input_size = 1
    hidden_size = 128
    output_size = 4
    num_layers = 1
    batch = 2
    seq = 8

    key = jax.random.PRNGKey(0)
    kp, kx = jax.random.split(key)
    params = init_params(kp, input_size, hidden_size, output_size)

    # One-time weight prep (hoisted out of the per-call path).
    prep, out_features = prepare_params(params)
    jax.block_until_ready(prep)

    x = jax.random.normal(kx, (batch, seq, input_size), jnp.float32)
    hidden = (jnp.zeros((num_layers, batch, hidden_size), jnp.float32),
              jnp.zeros((num_layers, batch, hidden_size), jnp.float32))

    logits, (h_n, c_n) = lstm_model_forward(x, hidden, prep,
                                            out_features=out_features)
    jax.block_until_ready((logits, h_n, c_n))

    ref_logits, (ref_h, ref_c) = ref_forward(x, hidden, params)
    assert logits.shape == (batch, output_size)
    assert h_n.shape == (num_layers, batch, hidden_size)
    assert c_n.shape == (num_layers, batch, hidden_size)
    assert jnp.allclose(logits, ref_logits, rtol=2e-2, atol=2e-2)
    assert jnp.allclose(h_n, ref_h, rtol=2e-2, atol=2e-2)
    assert jnp.allclose(c_n, ref_c, rtol=2e-2, atol=2e-2)

    print("KERNEL_OK")
</pallas_src>

<mosaic_0001>
module attributes {stable_mosaic.version = 11 : i64} {
  func.func @lstm_fc_kernel(%arg0: memref<64x1xf32, #tpu.memory_space<vmem>>, %arg1: memref<8x128xf32, #tpu.memory_space<vmem>>, %arg2: memref<8x128xf32, #tpu.memory_space<vmem>>, %arg3: memref<1x512xf32, #tpu.memory_space<vmem>>, %arg4: memref<128x512xbf16, #tpu.memory_space<vmem>>, %arg5: memref<1x512xf32, #tpu.memory_space<vmem>>, %arg6: memref<128x128xf32, #tpu.memory_space<vmem>>, %arg7: memref<1x128xf32, #tpu.memory_space<vmem>>, %arg8: memref<8x128xf32, #tpu.memory_space<vmem>>, %arg9: memref<8x128xf32, #tpu.memory_space<vmem>>, %arg10: memref<8x128xf32, #tpu.memory_space<vmem>>, %arg11: memref<64x512xf32, #tpu.memory_space<vmem>>) attributes {dimension_semantics = [], scalar_prefetch = 0 : i64, scratch_operands = 1 : i64, tpu.core_type = #tpu.core_type<tc>} {
    %c0 = arith.constant 0 : index
    %c0_0 = arith.constant 0 : index
    %0 = vector.load %arg0[%c0, %c0_0] : memref<64x1xf32, #tpu.memory_space<vmem>>, vector<64x1xf32>
    %c0_1 = arith.constant 0 : index
    %c0_2 = arith.constant 0 : index
    %1 = vector.load %arg3[%c0_1, %c0_2] : memref<1x512xf32, #tpu.memory_space<vmem>>, vector<1x512xf32>
    %2 = vector.broadcast %0 : vector<64x1xf32> to vector<64x512xf32>
    %3 = vector.broadcast %1 : vector<1x512xf32> to vector<64x512xf32>
    %4 = arith.mulf %2, %3 : vector<64x512xf32>
    %c0_3 = arith.constant 0 : index
    %c0_4 = arith.constant 0 : index
    %5 = vector.load %arg5[%c0_3, %c0_4] : memref<1x512xf32, #tpu.memory_space<vmem>>, vector<1x512xf32>
    %6 = vector.broadcast %5 : vector<1x512xf32> to vector<64x512xf32>
    %7 = arith.addf %4, %6 : vector<64x512xf32>
    %c0_5 = arith.constant 0 : index
    %c0_6 = arith.constant 0 : index
    %8 = vector.load %arg11[%c0_5, %c0_6] : memref<64x512xf32, #tpu.memory_space<vmem>>, vector<64x512xf32>
    tpu.vector_store %arg11[%c0_5, %c0_6], %7 {strides = array<i32>} : memref<64x512xf32, #tpu.memory_space<vmem>>, vector<64x512xf32>,
    %c0_7 = arith.constant 0 : index
    %c0_8 = arith.constant 0 : index
    %9 = vector.load %arg1[%c0_7, %c0_8] : memref<8x128xf32, #tpu.memory_space<vmem>>, vector<8x128xf32>
    %10 = arith.truncf %9 : vector<8x128xf32> to vector<8x128xbf16>
    %c0_9 = arith.constant 0 : index
    %c0_10 = arith.constant 0 : index
    %11 = vector.load %arg2[%c0_9, %c0_10] : memref<8x128xf32, #tpu.memory_space<vmem>>, vector<8x128xf32>
    %c0_11 = arith.constant 0 : index
    %c0_12 = arith.constant 0 : index
    %12 = vector.load %arg11[%c0_11, %c0_12] : memref<64x512xf32, #tpu.memory_space<vmem>>, vector<8x512xf32>
    %c0_13 = arith.constant 0 : index
    %c0_14 = arith.constant 0 : index
    %13 = vector.load %arg4[%c0_13, %c0_14] : memref<128x512xbf16, #tpu.memory_space<vmem>>, vector<128x512xbf16>
    %cst = arith.constant dense<0.000000e+00> : vector<8x512xf32>
    %14 = tpu.matmul %10, %13, %cst {dimension_numbers = #tpu.dot_dimension_numbers<[1], [0], [0], [1], [0, 0, 1, 1], [], []>} : vector<8x128xbf16>, vector<128x512xbf16>, vector<8x512xf32> -> vector<8x512xf32>
    %15 = arith.addf %12, %14 : vector<8x512xf32>
    %16 = vector.extract_strided_slice %15 {offsets = [0, 0], sizes = [8, 384], strides = [1, 1]} : vector<8x512xf32> to vector<8x384xf32>
    %17 = arith.truncf %16 : vector<8x384xf32> to vector<8x384xbf16>
    %18 = math.tanh %17 : vector<8x384xbf16>
    %cst_15 = arith.constant 5.000000e-01 : bf16
    %19 = vector.broadcast %cst_15 : bf16 to vector<8x384xbf16>
    %20 = arith.mulf %18, %19 : vector<8x384xbf16>
    %cst_16 = arith.constant 5.000000e-01 : bf16
    %21 = vector.broadcast %cst_16 : bf16 to vector<8x384xbf16>
    %22 = arith.addf %20, %21 : vector<8x384xbf16>
    %23 = vector.extract_strided_slice %22 {offsets = [0, 0], sizes = [8, 128], strides = [1, 1]} : vector<8x384xbf16> to vector<8x128xbf16>
    %24 = vector.extract_strided_slice %22 {offsets = [0, 128], sizes = [8, 128], strides = [1, 1]} : vector<8x384xbf16> to vector<8x128xbf16>
    %25 = vector.extract_strided_slice %22 {offsets = [0, 256], sizes = [8, 128], strides = [1, 1]} : vector<8x384xbf16> to vector<8x128xbf16>
    %26 = vector.extract_strided_slice %15 {offsets = [0, 384], sizes = [8, 128], strides = [1, 1]} : vector<8x512xf32> to vector<8x128xf32>
    %27 = arith.truncf %26 : vector<8x128xf32> to vector<8x128xbf16>
    %28 = math.tanh %27 : vector<8x128xbf16>
    %29 = arith.extf %24 : vector<8x128xbf16> to vector<8x128xf32>
    %30 = arith.mulf %29, %11 : vector<8x128xf32>
    %31 = arith.mulf %23, %28 : vector<8x128xbf16>
    %32 = arith.extf %31 : vector<8x128xbf16> to vector<8x128xf32>
    %33 = arith.addf %30, %32 : vector<8x128xf32>
    %34 = arith.truncf %33 : vector<8x128xf32> to vector<8x128xbf16>
    %35 = math.tanh %34 : vector<8x128xbf16>
    %36 = arith.mulf %25, %35 : vector<8x128xbf16>
    %c8 = arith.constant 8 : index
    %c0_17 = arith.constant 0 : index
    %37 = vector.load %arg11[%c8, %c0_17] : memref<64x512xf32, #tpu.memory_space<vmem>>, vector<8x512xf32>
    %c0_18 = arith.constant 0 : index
    %c0_19 = arith.constant 0 : index
    %38 = vector.load %arg4[%c0_18, %c0_19] : memref<128x512xbf16, #tpu.memory_space<vmem>>, vector<128x512xbf16>
    %cst_20 = arith.constant dense<0.000000e+00> : vector<8x512xf32>
    %39 = tpu.matmul %36, %38, %cst_20 {dimension_numbers = #tpu.dot_dimension_numbers<[1], [0], [0], [1], [0, 0, 1, 1], [], []>} : vector<8x128xbf16>, vector<128x512xbf16>, vector<8x512xf32> -> vector<8x512xf32>
    %40 = arith.addf %37, %39 : vector<8x512xf32>
    %41 = vector.extract_strided_slice %40 {offsets = [0, 0], sizes = [8, 384], strides = [1, 1]} : vector<8x512xf32> to vector<8x384xf32>
    %42 = arith.truncf %41 : vector<8x384xf32> to vector<8x384xbf16>
    %43 = math.tanh %42 : vector<8x384xbf16>
    %cst_21 = arith.constant 5.000000e-01 : bf16
    %44 = vector.broadcast %cst_21 : bf16 to vector<8x384xbf16>
    %45 = arith.mulf %43, %44 : vector<8x384xbf16>
    %cst_22 = arith.constant 5.000000e-01 : bf16
    %46 = vector.broadcast %cst_22 : bf16 to vector<8x384xbf16>
    %47 = arith.addf %45, %46 : vector<8x384xbf16>
    %48 = vector.extract_strided_slice %47 {offsets = [0, 0], sizes = [8, 128], strides = [1, 1]} : vector<8x384xbf16> to vector<8x128xbf16>
    %49 = vector.extract_strided_slice %47 {offsets = [0, 128], sizes = [8, 128], strides = [1, 1]} : vector<8x384xbf16> to vector<8x128xbf16>
    %50 = vector.extract_strided_slice %47 {offsets = [0, 256], sizes = [8, 128], strides = [1, 1]} : vector<8x384xbf16> to vector<8x128xbf16>
    %51 = vector.extract_strided_slice %40 {offsets = [0, 384], sizes = [8, 128], strides = [1, 1]} : vector<8x512xf32> to vector<8x128xf32>
    %52 = arith.truncf %51 : vector<8x128xf32> to vector<8x128xbf16>
    %53 = math.tanh %52 : vector<8x128xbf16>
    %54 = arith.extf %49 : vector<8x128xbf16> to vector<8x128xf32>
    %55 = arith.mulf %54, %33 : vector<8x128xf32>
    %56 = arith.mulf %48, %53 : vector<8x128xbf16>
    %57 = arith.extf %56 : vector<8x128xbf16> to vector<8x128xf32>
    %58 = arith.addf %55, %57 : vector<8x128xf32>
    %59 = arith.truncf %58 : vector<8x128xf32> to vector<8x128xbf16>
    %60 = math.tanh %59 : vector<8x128xbf16>
    %61 = arith.mulf %50, %60 : vector<8x128xbf16>
    %c16 = arith.constant 16 : index
    %c0_23 = arith.constant 0 : index
    %62 = vector.load %arg11[%c16, %c0_23] : memref<64x512xf32, #tpu.memory_space<vmem>>, vector<8x512xf32>
    %c0_24 = arith.constant 0 : index
    %c0_25 = arith.constant 0 : index
    %63 = vector.load %arg4[%c0_24, %c0_25] : memref<128x512xbf16, #tpu.memory_space<vmem>>, vector<128x512xbf16>
    %cst_26 = arith.constant dense<0.000000e+00> : vector<8x512xf32>
    %64 = tpu.matmul %61, %63, %cst_26 {dimension_numbers = #tpu.dot_dimension_numbers<[1], [0], [0], [1], [0, 0, 1, 1], [], []>} : vector<8x128xbf16>, vector<128x512xbf16>, vector<8x512xf32> -> vector<8x512xf32>
    %65 = arith.addf %62, %64 : vector<8x512xf32>
    %66 = vector.extract_strided_slice %65 {offsets = [0, 0], sizes = [8, 384], strides = [1, 1]} : vector<8x512xf32> to vector<8x384xf32>
    %67 = arith.truncf %66 : vector<8x384xf32> to vector<8x384xbf16>
    %68 = math.tanh %67 : vector<8x384xbf16>
    %cst_27 = arith.constant 5.000000e-01 : bf16
    %69 = vector.broadcast %cst_27 : bf16 to vector<8x384xbf16>
    %70 = arith.mulf %68, %69 : vector<8x384xbf16>
    %cst_28 = arith.constant 5.000000e-01 : bf16
    %71 = vector.broadcast %cst_28 : bf16 to vector<8x384xbf16>
    %72 = arith.addf %70, %71 : vector<8x384xbf16>
    %73 = vector.extract_strided_slice %72 {offsets = [0, 0], sizes = [8, 128], strides = [1, 1]} : vector<8x384xbf16> to vector<8x128xbf16>
    %74 = vector.extract_strided_slice %72 {offsets = [0, 128], sizes = [8, 128], strides = [1, 1]} : vector<8x384xbf16> to vector<8x128xbf16>
    %75 = vector.extract_strided_slice %72 {offsets = [0, 256], sizes = [8, 128], strides = [1, 1]} : vector<8x384xbf16> to vector<8x128xbf16>
    %76 = vector.extract_strided_slice %65 {offsets = [0, 384], sizes = [8, 128], strides = [1, 1]} : vector<8x512xf32> to vector<8x128xf32>
    %77 = arith.truncf %76 : vector<8x128xf32> to vector<8x128xbf16>
    %78 = math.tanh %77 : vector<8x128xbf16>
    %79 = arith.extf %74 : vector<8x128xbf16> to vector<8x128xf32>
    %80 = arith.mulf %79, %58 : vector<8x128xf32>
    %81 = arith.mulf %73, %78 : vector<8x128xbf16>
    %82 = arith.extf %81 : vector<8x128xbf16> to vector<8x128xf32>
    %83 = arith.addf %80, %82 : vector<8x128xf32>
    %84 = arith.truncf %83 : vector<8x128xf32> to vector<8x128xbf16>
    %85 = math.tanh %84 : vector<8x128xbf16>
    %86 = arith.mulf %75, %85 : vector<8x128xbf16>
    %c24 = arith.constant 24 : index
    %c0_29 = arith.constant 0 : index
    %87 = vector.load %arg11[%c24, %c0_29] : memref<64x512xf32, #tpu.memory_space<vmem>>, vector<8x512xf32>
    %c0_30 = arith.constant 0 : index
    %c0_31 = arith.constant 0 : index
    %88 = vector.load %arg4[%c0_30, %c0_31] : memref<128x512xbf16, #tpu.memory_space<vmem>>, vector<128x512xbf16>
    %cst_32 = arith.constant dense<0.000000e+00> : vector<8x512xf32>
    %89 = tpu.matmul %86, %88, %cst_32 {dimension_numbers = #tpu.dot_dimension_numbers<[1], [0], [0], [1], [0, 0, 1, 1], [], []>} : vector<8x128xbf16>, vector<128x512xbf16>, vector<8x512xf32> -> vector<8x512xf32>
    %90 = arith.addf %87, %89 : vector<8x512xf32>
    %91 = vector.extract_strided_slice %90 {offsets = [0, 0], sizes = [8, 384], strides = [1, 1]} : vector<8x512xf32> to vector<8x384xf32>
    %92 = arith.truncf %91 : vector<8x384xf32> to vector<8x384xbf16>
    %93 = math.tanh %92 : vector<8x384xbf16>
    %cst_33 = arith.constant 5.000000e-01 : bf16
    %94 = vector.broadcast %cst_33 : bf16 to vector<8x384xbf16>
    %95 = arith.mulf %93, %94 : vector<8x384xbf16>
    %cst_34 = arith.constant 5.000000e-01 : bf16
    %96 = vector.broadcast %cst_34 : bf16 to vector<8x384xbf16>
    %97 = arith.addf %95, %96 : vector<8x384xbf16>
    %98 = vector.extract_strided_slice %97 {offsets = [0, 0], sizes = [8, 128], strides = [1, 1]} : vector<8x384xbf16> to vector<8x128xbf16>
    %99 = vector.extract_strided_slice %97 {offsets = [0, 128], sizes = [8, 128], strides = [1, 1]} : vector<8x384xbf16> to vector<8x128xbf16>
    %100 = vector.extract_strided_slice %97 {offsets = [0, 256], sizes = [8, 128], strides = [1, 1]} : vector<8x384xbf16> to vector<8x128xbf16>
    %101 = vector.extract_strided_slice %90 {offsets = [0, 384], sizes = [8, 128], strides = [1, 1]} : vector<8x512xf32> to vector<8x128xf32>
    %102 = arith.truncf %101 : vector<8x128xf32> to vector<8x128xbf16>
    %103 = math.tanh %102 : vector<8x128xbf16>
    %104 = arith.extf %99 : vector<8x128xbf16> to vector<8x128xf32>
    %105 = arith.mulf %104, %83 : vector<8x128xf32>
    %106 = arith.mulf %98, %103 : vector<8x128xbf16>
    %107 = arith.extf %106 : vector<8x128xbf16> to vector<8x128xf32>
    %108 = arith.addf %105, %107 : vector<8x128xf32>
    %109 = arith.truncf %108 : vector<8x128xf32> to vector<8x128xbf16>
    %110 = math.tanh %109 : vector<8x128xbf16>
    %111 = arith.mulf %100, %110 : vector<8x128xbf16>
    %c32 = arith.constant 32 : index
    %c0_35 = arith.constant 0 : index
    %112 = vector.load %arg11[%c32, %c0_35] : memref<64x512xf32, #tpu.memory_space<vmem>>, vector<8x512xf32>
    %c0_36 = arith.constant 0 : index
    %c0_37 = arith.constant 0 : index
    %113 = vector.load %arg4[%c0_36, %c0_37] : memref<128x512xbf16, #tpu.memory_space<vmem>>, vector<128x512xbf16>
    %cst_38 = arith.constant dense<0.000000e+00> : vector<8x512xf32>
    %114 = tpu.matmul %111, %113, %cst_38 {dimension_numbers = #tpu.dot_dimension_numbers<[1], [0], [0], [1], [0, 0, 1, 1], [], []>} : vector<8x128xbf16>, vector<128x512xbf16>, vector<8x512xf32> -> vector<8x512xf32>
    %115 = arith.addf %112, %114 : vector<8x512xf32>
    %116 = vector.extract_strided_slice %115 {offsets = [0, 0], sizes = [8, 384], strides = [1, 1]} : vector<8x512xf32> to vector<8x384xf32>
    %117 = arith.truncf %116 : vector<8x384xf32> to vector<8x384xbf16>
    %118 = math.tanh %117 : vector<8x384xbf16>
    %cst_39 = arith.constant 5.000000e-01 : bf16
    %119 = vector.broadcast %cst_39 : bf16 to vector<8x384xbf16>
    %120 = arith.mulf %118, %119 : vector<8x384xbf16>
    %cst_40 = arith.constant 5.000000e-01 : bf16
    %121 = vector.broadcast %cst_40 : bf16 to vector<8x384xbf16>
    %122 = arith.addf %120, %121 : vector<8x384xbf16>
    %123 = vector.extract_strided_slice %122 {offsets = [0, 0], sizes = [8, 128], strides = [1, 1]} : vector<8x384xbf16> to vector<8x128xbf16>
    %124 = vector.extract_strided_slice %122 {offsets = [0, 128], sizes = [8, 128], strides = [1, 1]} : vector<8x384xbf16> to vector<8x128xbf16>
    %125 = vector.extract_strided_slice %122 {offsets = [0, 256], sizes = [8, 128], strides = [1, 1]} : vector<8x384xbf16> to vector<8x128xbf16>
    %126 = vector.extract_strided_slice %115 {offsets = [0, 384], sizes = [8, 128], strides = [1, 1]} : vector<8x512xf32> to vector<8x128xf32>
    %127 = arith.truncf %126 : vector<8x128xf32> to vector<8x128xbf16>
    %128 = math.tanh %127 : vector<8x128xbf16>
    %129 = arith.extf %124 : vector<8x128xbf16> to vector<8x128xf32>
    %130 = arith.mulf %129, %108 : vector<8x128xf32>
    %131 = arith.mulf %123, %128 : vector<8x128xbf16>
    %132 = arith.extf %131 : vector<8x128xbf16> to vector<8x128xf32>
    %133 = arith.addf %130, %132 : vector<8x128xf32>
    %134 = arith.truncf %133 : vector<8x128xf32> to vector<8x128xbf16>
    %135 = math.tanh %134 : vector<8x128xbf16>
    %136 = arith.mulf %125, %135 : vector<8x128xbf16>
    %c40 = arith.constant 40 : index
    %c0_41 = arith.constant 0 : index
    %137 = vector.load %arg11[%c40, %c0_41] : memref<64x512xf32, #tpu.memory_space<vmem>>, vector<8x512xf32>
    %c0_42 = arith.constant 0 : index
    %c0_43 = arith.constant 0 : index
    %138 = vector.load %arg4[%c0_42, %c0_43] : memref<128x512xbf16, #tpu.memory_space<vmem>>, vector<128x512xbf16>
    %cst_44 = arith.constant dense<0.000000e+00> : vector<8x512xf32>
    %139 = tpu.matmul %136, %138, %cst_44 {dimension_numbers = #tpu.dot_dimension_numbers<[1], [0], [0], [1], [0, 0, 1, 1], [], []>} : vector<8x128xbf16>, vector<128x512xbf16>, vector<8x512xf32> -> vector<8x512xf32>
    %140 = arith.addf %137, %139 : vector<8x512xf32>
    %141 = vector.extract_strided_slice %140 {offsets = [0, 0], sizes = [8, 384], strides = [1, 1]} : vector<8x512xf32> to vector<8x384xf32>
    %142 = arith.truncf %141 : vector<8x384xf32> to vector<8x384xbf16>
    %143 = math.tanh %142 : vector<8x384xbf16>
    %cst_45 = arith.constant 5.000000e-01 : bf16
    %144 = vector.broadcast %cst_45 : bf16 to vector<8x384xbf16>
    %145 = arith.mulf %143, %144 : vector<8x384xbf16>
    %cst_46 = arith.constant 5.000000e-01 : bf16
    %146 = vector.broadcast %cst_46 : bf16 to vector<8x384xbf16>
    %147 = arith.addf %145, %146 : vector<8x384xbf16>
    %148 = vector.extract_strided_slice %147 {offsets = [0, 0], sizes = [8, 128], strides = [1, 1]} : vector<8x384xbf16> to vector<8x128xbf16>
    %149 = vector.extract_strided_slice %147 {offsets = [0, 128], sizes = [8, 128], strides = [1, 1]} : vector<8x384xbf16> to vector<8x128xbf16>
    %150 = vector.extract_strided_slice %147 {offsets = [0, 256], sizes = [8, 128], strides = [1, 1]} : vector<8x384xbf16> to vector<8x128xbf16>
    %151 = vector.extract_strided_slice %140 {offsets = [0, 384], sizes = [8, 128], strides = [1, 1]} : vector<8x512xf32> to vector<8x128xf32>
    %152 = arith.truncf %151 : vector<8x128xf32> to vector<8x128xbf16>
    %153 = math.tanh %152 : vector<8x128xbf16>
    %154 = arith.extf %149 : vector<8x128xbf16> to vector<8x128xf32>
    %155 = arith.mulf %154, %133 : vector<8x128xf32>
    %156 = arith.mulf %148, %153 : vector<8x128xbf16>
    %157 = arith.extf %156 : vector<8x128xbf16> to vector<8x128xf32>
    %158 = arith.addf %155, %157 : vector<8x128xf32>
    %159 = arith.truncf %158 : vector<8x128xf32> to vector<8x128xbf16>
    %160 = math.tanh %159 : vector<8x128xbf16>
    %161 = arith.mulf %150, %160 : vector<8x128xbf16>
    %c48 = arith.constant 48 : index
    %c0_47 = arith.constant 0 : index
    %162 = vector.load %arg11[%c48, %c0_47] : memref<64x512xf32, #tpu.memory_space<vmem>>, vector<8x512xf32>
    %c0_48 = arith.constant 0 : index
    %c0_49 = arith.constant 0 : index
    %163 = vector.load %arg4[%c0_48, %c0_49] : memref<128x512xbf16, #tpu.memory_space<vmem>>, vector<128x512xbf16>
    %cst_50 = arith.constant dense<0.000000e+00> : vector<8x512xf32>
    %164 = tpu.matmul %161, %163, %cst_50 {dimension_numbers = #tpu.dot_dimension_numbers<[1], [0], [0], [1], [0, 0, 1, 1], [], []>} : vector<8x128xbf16>, vector<128x512xbf16>, vector<8x512xf32> -> vector<8x512xf32>
    %165 = arith.addf %162, %164 : vector<8x512xf32>
    %166 = vector.extract_strided_slice %165 {offsets = [0, 0], sizes = [8, 384], strides = [1, 1]} : vector<8x512xf32> to vector<8x384xf32>
    %167 = arith.truncf %166 : vector<8x384xf32> to vector<8x384xbf16>
    %168 = math.tanh %167 : vector<8x384xbf16>
    %cst_51 = arith.constant 5.000000e-01 : bf16
    %169 = vector.broadcast %cst_51 : bf16 to vector<8x384xbf16>
    %170 = arith.mulf %168, %169 : vector<8x384xbf16>
    %cst_52 = arith.constant 5.000000e-01 : bf16
    %171 = vector.broadcast %cst_52 : bf16 to vector<8x384xbf16>
    %172 = arith.addf %170, %171 : vector<8x384xbf16>
    %173 = vector.extract_strided_slice %172 {offsets = [0, 0], sizes = [8, 128], strides = [1, 1]} : vector<8x384xbf16> to vector<8x128xbf16>
    %174 = vector.extract_strided_slice %172 {offsets = [0, 128], sizes = [8, 128], strides = [1, 1]} : vector<8x384xbf16> to vector<8x128xbf16>
    %175 = vector.extract_strided_slice %172 {offsets = [0, 256], sizes = [8, 128], strides = [1, 1]} : vector<8x384xbf16> to vector<8x128xbf16>
    %176 = vector.extract_strided_slice %165 {offsets = [0, 384], sizes = [8, 128], strides = [1, 1]} : vector<8x512xf32> to vector<8x128xf32>
    %177 = arith.truncf %176 : vector<8x128xf32> to vector<8x128xbf16>
    %178 = math.tanh %177 : vector<8x128xbf16>
    %179 = arith.extf %174 : vector<8x128xbf16> to vector<8x128xf32>
    %180 = arith.mulf %179, %158 : vector<8x128xf32>
    %181 = arith.mulf %173, %178 : vector<8x128xbf16>
    %182 = arith.extf %181 : vector<8x128xbf16> to vector<8x128xf32>
    %183 = arith.addf %180, %182 : vector<8x128xf32>
    %184 = arith.truncf %183 : vector<8x128xf32> to vector<8x128xbf16>
    %185 = math.tanh %184 : vector<8x128xbf16>
    %186 = arith.mulf %175, %185 : vector<8x128xbf16>
    %c56 = arith.constant 56 : index
    %c0_53 = arith.constant 0 : index
    %187 = vector.load %arg11[%c56, %c0_53] : memref<64x512xf32, #tpu.memory_space<vmem>>, vector<8x512xf32>
    %c0_54 = arith.constant 0 : index
    %c0_55 = arith.constant 0 : index
    %188 = vector.load %arg4[%c0_54, %c0_55] : memref<128x512xbf16, #tpu.memory_space<vmem>>, vector<128x512xbf16>
    %cst_56 = arith.constant dense<0.000000e+00> : vector<8x512xf32>
    %189 = tpu.matmul %186, %188, %cst_56 {dimension_numbers = #tpu.dot_dimension_numbers<[1], [0], [0], [1], [0, 0, 1, 1], [], []>} : vector<8x128xbf16>, vector<128x512xbf16>, vector<8x512xf32> -> vector<8x512xf32>
    %190 = arith.addf %187, %189 : vector<8x512xf32>
    %191 = vector.extract_strided_slice %190 {offsets = [0, 0], sizes = [8, 384], strides = [1, 1]} : vector<8x512xf32> to vector<8x384xf32>
    %192 = arith.truncf %191 : vector<8x384xf32> to vector<8x384xbf16>
    %193 = math.tanh %192 : vector<8x384xbf16>
    %cst_57 = arith.constant 5.000000e-01 : bf16
    %194 = vector.broadcast %cst_57 : bf16 to vector<8x384xbf16>
    %195 = arith.mulf %193, %194 : vector<8x384xbf16>
    %cst_58 = arith.constant 5.000000e-01 : bf16
    %196 = vector.broadcast %cst_58 : bf16 to vector<8x384xbf16>
    %197 = arith.addf %195, %196 : vector<8x384xbf16>
    %198 = vector.extract_strided_slice %197 {offsets = [0, 0], sizes = [8, 128], strides = [1, 1]} : vector<8x384xbf16> to vector<8x128xbf16>
    %199 = vector.extract_strided_slice %197 {offsets = [0, 128], sizes = [8, 128], strides = [1, 1]} : vector<8x384xbf16> to vector<8x128xbf16>
    %200 = vector.extract_strided_slice %197 {offsets = [0, 256], sizes = [8, 128], strides = [1, 1]} : vector<8x384xbf16> to vector<8x128xbf16>
    %201 = vector.extract_strided_slice %190 {offsets = [0, 384], sizes = [8, 128], strides = [1, 1]} : vector<8x512xf32> to vector<8x128xf32>
    %202 = arith.truncf %201 : vector<8x128xf32> to vector<8x128xbf16>
    %203 = math.tanh %202 : vector<8x128xbf16>
    %204 = arith.extf %199 : vector<8x128xbf16> to vector<8x128xf32>
    %205 = arith.mulf %204, %183 : vector<8x128xf32>
    %206 = arith.mulf %198, %203 : vector<8x128xbf16>
    %207 = arith.extf %206 : vector<8x128xbf16> to vector<8x128xf32>
    %208 = arith.addf %205, %207 : vector<8x128xf32>
    %209 = arith.truncf %208 : vector<8x128xf32> to vector<8x128xbf16>
    %210 = math.tanh %209 : vector<8x128xbf16>
    %211 = arith.mulf %200, %210 : vector<8x128xbf16>
    %212 = arith.extf %211 : vector<8x128xbf16> to vector<8x128xf32>
    %c0_59 = arith.constant 0 : index
    %c0_60 = arith.constant 0 : index
    %213 = vector.load %arg9[%c0_59, %c0_60] : memref<8x128xf32, #tpu.memory_space<vmem>>, vector<8x128xf32>
    tpu.vector_store %arg9[%c0_59, %c0_60], %212 {strides = array<i32>} : memref<8x128xf32, #tpu.memory_space<vmem>>, vector<8x128xf32>,
    %c0_61 = arith.constant 0 : index
    %c0_62 = arith.constant 0 : index
    %214 = vector.load %arg10[%c0_61, %c0_62] : memref<8x128xf32, #tpu.memory_space<vmem>>, vector<8x128xf32>
    tpu.vector_store %arg10[%c0_61, %c0_62], %208 {strides = array<i32>} : memref<8x128xf32, #tpu.memory_space<vmem>>, vector<8x128xf32>,
    %215 = arith.extf %211 : vector<8x128xbf16> to vector<8x128xf32>
    %c0_63 = arith.constant 0 : index
    %c0_64 = arith.constant 0 : index
    %216 = vector.load %arg6[%c0_63, %c0_64] : memref<128x128xf32, #tpu.memory_space<vmem>>, vector<128x128xf32>
    %cst_65 = arith.constant dense<0.000000e+00> : vector<8x128xf32>
    %217 = tpu.matmul %215, %216, %cst_65 {dimension_numbers = #tpu.dot_dimension_numbers<[1], [0], [0], [1], [0, 0, 1, 1], [], []>} : vector<8x128xf32>, vector<128x128xf32>, vector<8x128xf32> -> vector<8x128xf32>
    %c0_66 = arith.constant 0 : index
    %c0_67 = arith.constant 0 : index
    %218 = vector.load %arg7[%c0_66, %c0_67] : memref<1x128xf32, #tpu.memory_space<vmem>>, vector<1x128xf32>
    %219 = vector.broadcast %218 : vector<1x128xf32> to vector<8x128xf32>
    %220 = arith.addf %217, %219 : vector<8x128xf32>
    %c0_68 = arith.constant 0 : index
    %c0_69 = arith.constant 0 : index
    %221 = vector.load %arg8[%c0_68, %c0_69] : memref<8x128xf32, #tpu.memory_space<vmem>>, vector<8x128xf32>
    tpu.vector_store %arg8[%c0_68, %c0_69], %220 {strides = array<i32>} : memref<8x128xf32, #tpu.memory_space<vmem>>, vector<8x128xf32>,
    return
  }
}

</mosaic_0001>

<llo_original>
// kernel: lstm_model_forward.1
$region0: #{lstm_model_forward.1}
  #allocation0 [shape = 'u32[]', space=smem, size = 0x4, offset = 0x4, fixed_abs, tag = 'smem constant byte address 0x4 - core index']
  #allocation1 [shape = 'u32[144,128]{1,0:T(1,128)}', space=vmem, size = 0x12000, scoped, tag = 'internal scratch']
  #allocation2 [shape = 'f32[64,512]{1,0:T(8,128)}', space=vmem, size = 0x20000, scoped, tag = 'scratch operand']
  %s0 = inlined_call_operand.vmem [shape: f32[64,1], index: 0, kind: input, shape index: {}]
  %s1 = inlined_call_operand.vmem [shape: f32[8,128], index: 1, kind: input, shape index: {}]
  %s2 = inlined_call_operand.vmem [shape: f32[8,128], index: 2, kind: input, shape index: {}]
  %s3 = inlined_call_operand.vmem [shape: f32[1,512], index: 3, kind: input, shape index: {}]
  %s4 = inlined_call_operand.hbm [shape: bf16[128,512], index: 4, kind: input, shape index: {}]
  %s5 = inlined_call_operand.vmem [shape: f32[1,512], index: 5, kind: input, shape index: {}]
  %s6 = inlined_call_operand.vmem [shape: f32[128,128], index: 6, kind: input, shape index: {}]
  %s7 = inlined_call_operand.vmem [shape: f32[1,128], index: 7, kind: input, shape index: {}]
  %s8 = inlined_call_operand.vmem [shape: f32[8,128], index: 8, kind: output, shape index: {0}]
  %s9 = inlined_call_operand.vmem [shape: f32[8,128], index: 9, kind: output, shape index: {1}]
  %s10 = inlined_call_operand.vmem [shape: f32[8,128], index: 10, kind: output, shape index: {2}]
  %11 = xla_tuple %s8, %s9, %s10
  %s12 = sld [smem:[#allocation0]]
  $region62: #{lstm_model_forward.1} parent=0
    _
  %s14 = ssub.s32 1, %s12
  %s15 = scalar_select 0, %s14, %s12
  $region1: #{lstm_model_forward.1} parent=0
    #allocation3 [shape = 'u8[131072]{0}', space=vmem, size = 0x20000, scoped, tag = 'input window, operand 4, single buffered']
    #allocation4 [shape = 's32[1]{0}', space=sflag, size = 0x4, scoped, tag = 'scoped memory for lstm_model_forward.1']
    %16 = vsyncpa [#allocation4], 0
    // Predicated region
    $region2: #{lstm_model_forward.1} parent=1 // pred_check
      _
    $region3: #{lstm_model_forward.1} parent=1 // pred_check_branch
      %18 = sbr.rel (0) target = $region5
    $region4: #{lstm_model_forward.1} parent=1 // pred_region
      _
    $region5: #{lstm_model_forward.1} parent=1 // pred_fallthru
      _
    // Predicated region
    $region6: #{lstm_model_forward.1} parent=1 // pred_check
      _
    $region7: #{lstm_model_forward.1} parent=1 // pred_check_branch
      %20 = sbr.rel (0) target = $region9
    $region8: #{lstm_model_forward.1} parent=1 // pred_region
      _
    $region9: #{lstm_model_forward.1} parent=1 // pred_fallthru
      _
    // Predicated region
    $region10: #{lstm_model_forward.1} parent=1 // pred_check
      _
    $region11: #{lstm_model_forward.1} parent=1 // pred_check_branch
      %22 = sbr.rel (0) target = $region13
    $region12: #{lstm_model_forward.1} parent=1 // pred_region
      _
    $region13: #{lstm_model_forward.1} parent=1 // pred_fallthru
      _
    // Predicated region
    $region14: #{lstm_model_forward.1} parent=1 // pred_check
      _
    $region15: #{lstm_model_forward.1} parent=1 // pred_check_branch
      %24 = sbr.rel (0) target = $region17
    $region16: #{lstm_model_forward.1} parent=1 // pred_region
      _
    $region17: #{lstm_model_forward.1} parent=1 // pred_fallthru
      _
    // Predicated region
    $region18: #{lstm_model_forward.1} parent=1 // pred_check
      _
    $region19: #{lstm_model_forward.1} parent=1 // pred_check_branch
      %26 = sbr.rel (0) target = $region21
    $region20: #{lstm_model_forward.1} parent=1 // pred_region
      %s28 = ssub.s32 4096, 4096
      %29 = vsyncadd [#allocation4], %s28
      %s30 = sshll.u32 [#allocation3], 4
      %s31 = int_to_ptr.vmem [resolvable:$true] %s30
      %36 = dma.hbm_to_vmem [thread:$0]  %s4, 4096, %s31, [#allocation4], 256, 256, 16
    $region21: #{lstm_model_forward.1} parent=1 // pred_fallthru
      _
    // Predicated region
    $region22: #{lstm_model_forward.1} parent=1 // pred_check
      _
    $region23: #{lstm_model_forward.1} parent=1 // pred_check_branch
      %38 = sbr.rel (0) target = $region25
    $region24: #{lstm_model_forward.1} parent=1 // pred_region
      _
    $region25: #{lstm_model_forward.1} parent=1 // pred_fallthru
      _
    // Predicated region
    $region26: #{lstm_model_forward.1} parent=1 // pred_check
      _
    $region27: #{lstm_model_forward.1} parent=1 // pred_check_branch
      %40 = sbr.rel (0) target = $region29
    $region28: #{lstm_model_forward.1} parent=1 // pred_region
      _
    $region29: #{lstm_model_forward.1} parent=1 // pred_fallthru
      _
    // Predicated region
    $region30: #{lstm_model_forward.1} parent=1 // pred_check
      _
    $region31: #{lstm_model_forward.1} parent=1 // pred_check_branch
      %42 = sbr.rel (0) target = $region33
    $region32: #{lstm_model_forward.1} parent=1 // pred_region
      _
    $region33: #{lstm_model_forward.1} parent=1 // pred_fallthru
      _
    // Predicated region
    $region34: #{lstm_model_forward.1} parent=1 // pred_check
      _
    $region35: #{lstm_model_forward.1} parent=1 // pred_check_branch
      %44 = sbr.rel (0) target = $region37
    $region36: #{lstm_model_forward.1} parent=1 // pred_region
      %45 = dma.done [#allocation4], 4096
    $region37: #{lstm_model_forward.1} parent=1 // pred_fallthru
      _
    %v48 = vld [vmem:[%s0] sm:$0xff]
    %v49 = vld [vmem:[%s0 + $0x8] sm:$0xff]
    %v50 = vld [vmem:[%s0 + $0x10] sm:$0xff]
    %v51 = vld [vmem:[%s0 + $0x18] sm:$0xff]
    %v52 = vld [vmem:[%s0 + $0x20] sm:$0xff]
    %v53 = vld [vmem:[%s0 + $0x28] sm:$0xff]
    %v54 = vld [vmem:[%s0 + $0x30] sm:$0xff]
    %v55 = vld [vmem:[%s0 + $0x38] sm:$0xff]
    %v56 = vld [vmem:[%s3] sm:$0xf]
    %58 = vset.pattern.permute.xlu0 0
    %59 = vperm.xlu0 %58, %v48
    %v60 = vpop.permute.xlu0 %59
    %63 = vset.pattern.permute.xlu0 0
    %64 = vperm.xlu0 %63, %v49
    %v65 = vpop.permute.xlu0 %64
    %68 = vset.pattern.permute.xlu0 0
    %69 = vperm.xlu0 %68, %v50
    %v70 = vpop.permute.xlu0 %69
    %73 = vset.pattern.permute.xlu0 0
    %74 = vperm.xlu0 %73, %v51
    %v75 = vpop.permute.xlu0 %74
    %78 = vset.pattern.permute.xlu0 0
    %79 = vperm.xlu0 %78, %v52
    %v80 = vpop.permute.xlu0 %79
    %83 = vset.pattern.permute.xlu0 0
    %84 = vperm.xlu0 %83, %v53
    %v85 = vpop.permute.xlu0 %84
    %88 = vset.pattern.permute.xlu0 0
    %89 = vperm.xlu0 %88, %v54
    %v90 = vpop.permute.xlu0 %89
    %93 = vset.pattern.permute.xlu0 0
    %94 = vperm.xlu0 %93, %v55
    %v95 = vpop.permute.xlu0 %94
    %v98 = vlaneseq
    %v99 = vshrl.u32 %v98, 7
    %v100 = vsub.s32 0, %v99
    %v101 = vrot.slane %v56, %v100
    %v102 = vlaneseq
    %v103 = vshrl.u32 %v102, 7
    %v104 = vsub.s32 1, %v103
    %v105 = vrot.slane %v56, %v104
    %v106 = vlaneseq
    %v107 = vshrl.u32 %v106, 7
    %v108 = vsub.s32 2, %v107
    %v109 = vrot.slane %v56, %v108
    %v110 = vlaneseq
    %v111 = vshrl.u32 %v110, 7
    %v112 = vsub.s32 3, %v111
    %v113 = vrot.slane %v56, %v112
    %v118 = vmul.f32 %v60, %v101
    %v119 = vmul.f32 %v60, %v105
    %v120 = vmul.f32 %v60, %v109
    %v121 = vmul.f32 %v60, %v113
    %v122 = vmul.f32 %v65, %v101
    %v123 = vmul.f32 %v65, %v105
    %v124 = vmul.f32 %v65, %v109
    %v125 = vmul.f32 %v65, %v113
    %v126 = vmul.f32 %v70, %v101
    %v127 = vmul.f32 %v70, %v105
    %v128 = vmul.f32 %v70, %v109
    %v129 = vmul.f32 %v70, %v113
    %v130 = vmul.f32 %v75, %v101
    %v131 = vmul.f32 %v75, %v105
    %v132 = vmul.f32 %v75, %v109
    %v133 = vmul.f32 %v75, %v113
    %v134 = vmul.f32 %v80, %v101
    %v135 = vmul.f32 %v80, %v105
    %v136 = vmul.f32 %v80, %v109
    %v137 = vmul.f32 %v80, %v113
    %v138 = vmul.f32 %v85, %v101
    %v139 = vmul.f32 %v85, %v105
    %v140 = vmul.f32 %v85, %v109
    %v141 = vmul.f32 %v85, %v113
    %v142 = vmul.f32 %v90, %v101
    %v143 = vmul.f32 %v90, %v105
    %v144 = vmul.f32 %v90, %v109
    %v145 = vmul.f32 %v90, %v113
    %v146 = vmul.f32 %v95, %v101
    %v147 = vmul.f32 %v95, %v105
    %v148 = vmul.f32 %v95, %v109
    %v149 = vmul.f32 %v95, %v113
    %v150 = vld [vmem:[%s5] sm:$0xf]
    %v152 = vlaneseq
    %v153 = vshrl.u32 %v152, 7
    %v154 = vsub.s32 0, %v153
    %v155 = vrot.slane %v150, %v154
    %v156 = vlaneseq
    %v157 = vshrl.u32 %v156, 7
    %v158 = vsub.s32 1, %v157
    %v159 = vrot.slane %v150, %v158
    %v160 = vlaneseq
    %v161 = vshrl.u32 %v160, 7
    %v162 = vsub.s32 2, %v161
    %v163 = vrot.slane %v150, %v162
    %v164 = vlaneseq
    %v165 = vshrl.u32 %v164, 7
    %v166 = vsub.s32 3, %v165
    %v167 = vrot.slane %v150, %v166
    %v172 = vadd.f32 %v118, %v155
    %v173 = vadd.f32 %v119, %v159
    %v174 = vadd.f32 %v120, %v163
    %v175 = vadd.f32 %v121, %v167
    %v176 = vadd.f32 %v122, %v155
    %v177 = vadd.f32 %v123, %v159
    %v178 = vadd.f32 %v124, %v163
    %v179 = vadd.f32 %v125, %v167
    %v180 = vadd.f32 %v126, %v155
    %v181 = vadd.f32 %v127, %v159
    %v182 = vadd.f32 %v128, %v163
    %v183 = vadd.f32 %v129, %v167
    %v184 = vadd.f32 %v130, %v155
    %v185 = vadd.f32 %v131, %v159
    %v186 = vadd.f32 %v132, %v163
    %v187 = vadd.f32 %v133, %v167
    %v188 = vadd.f32 %v134, %v155
    %v189 = vadd.f32 %v135, %v159
    %v190 = vadd.f32 %v136, %v163
    %v191 = vadd.f32 %v137, %v167
    %v192 = vadd.f32 %v138, %v155
    %v193 = vadd.f32 %v139, %v159
    %v194 = vadd.f32 %v140, %v163
    %v195 = vadd.f32 %v141, %v167
    %v196 = vadd.f32 %v142, %v155
    %v197 = vadd.f32 %v143, %v159
    %v198 = vadd.f32 %v144, %v163
    %v199 = vadd.f32 %v145, %v167
    %v200 = vadd.f32 %v146, %v155
    %v201 = vadd.f32 %v147, %v159
    %v202 = vadd.f32 %v148, %v163
    %v203 = vadd.f32 %v149, %v167
    %204 = vst [vmem:[#allocation2] sm:$0xff] %v172
    %205 = vst [vmem:[#allocation2 + $0x8] sm:$0xff] %v173
    %206 = vst [vmem:[#allocation2 + $0x10] sm:$0xff] %v174
    %207 = vst [vmem:[#allocation2 + $0x18] sm:$0xff] %v175
    %208 = vst [vmem:[#allocation2 + $0x20] sm:$0xff] %v176
    %209 = vst [vmem:[#allocation2 + $0x28] sm:$0xff] %v177
    %210 = vst [vmem:[#allocation2 + $0x30] sm:$0xff] %v178
    %211 = vst [vmem:[#allocation2 + $0x38] sm:$0xff] %v179
    %212 = vst [vmem:[#allocation2 + $0x40] sm:$0xff] %v180
    %213 = vst [vmem:[#allocation2 + $0x48] sm:$0xff] %v181
    %214 = vst [vmem:[#allocation2 + $0x50] sm:$0xff] %v182
    %215 = vst [vmem:[#allocation2 + $0x58] sm:$0xff] %v183
    %216 = vst [vmem:[#allocation2 + $0x60] sm:$0xff] %v184
    %217 = vst [vmem:[#allocation2 + $0x68] sm:$0xff] %v185
    %218 = vst [vmem:[#allocation2 + $0x70] sm:$0xff] %v186
    %219 = vst [vmem:[#allocation2 + $0x78] sm:$0xff] %v187
    %220 = vst [vmem:[#allocation2 + $0x80] sm:$0xff] %v188
    %221 = vst [vmem:[#allocation2 + $0x88] sm:$0xff] %v189
    %222 = vst [vmem:[#allocation2 + $0x90] sm:$0xff] %v190
    %223 = vst [vmem:[#allocation2 + $0x98] sm:$0xff] %v191
    %224 = vst [vmem:[#allocation2 + $0xa0] sm:$0xff] %v192
    %225 = vst [vmem:[#allocation2 + $0xa8] sm:$0xff] %v193
    %226 = vst [vmem:[#allocation2 + $0xb0] sm:$0xff] %v194
    %227 = vst [vmem:[#allocation2 + $0xb8] sm:$0xff] %v195
    %228 = vst [vmem:[#allocation2 + $0xc0] sm:$0xff] %v196
    %229 = vst [vmem:[#allocation2 + $0xc8] sm:$0xff] %v197
    %230 = vst [vmem:[#allocation2 + $0xd0] sm:$0xff] %v198
    %231 = vst [vmem:[#allocation2 + $0xd8] sm:$0xff] %v199
    %232 = vst [vmem:[#allocation2 + $0xe0] sm:$0xff] %v200
    %233 = vst [vmem:[#allocation2 + $0xe8] sm:$0xff] %v201
    %234 = vst [vmem:[#allocation2 + $0xf0] sm:$0xff] %v202
    %235 = vst [vmem:[#allocation2 + $0xf8] sm:$0xff] %v203
    %v236 = vld [vmem:[%s1] sm:$0xff]
    %v237 = vpack.c.bf16 %v236, %v236
    %v238 = vld [vmem:[%s2] sm:$0xff]
    %v239 = vld [vmem:[#allocation2] sm:$0xff]
    %v240 = vld [vmem:[#allocation2 + $0x8] sm:$0xff]
    %v241 = vld [vmem:[#allocation2 + $0x10] sm:$0xff]
    %v242 = vld [vmem:[#allocation2 + $0x18] sm:$0xff]
    %v243 = vld [vmem:[#allocation3] sm:$0xff]
    %v244 = vld [vmem:[#allocation3 + $0x8] sm:$0xff]
    %v245 = vld [vmem:[#allocation3 + $0x10] sm:$0xff]
    %v246 = vld [vmem:[#allocation3 + $0x18] sm:$0xff]
    %v247 = vld [vmem:[#allocation3 + $0x20] sm:$0xff]
    %v248 = vld [vmem:[#allocation3 + $0x28] sm:$0xff]
    %v249 = vld [vmem:[#allocation3 + $0x30] sm:$0xff]
    %v250 = vld [vmem:[#allocation3 + $0x38] sm:$0xff]
    %v251 = vld [vmem:[#allocation3 + $0x40] sm:$0xff]
    %v252 = vld [vmem:[#allocation3 + $0x48] sm:$0xff]
    %v253 = vld [vmem:[#allocation3 + $0x50] sm:$0xff]
    %v254 = vld [vmem:[#allocation3 + $0x58] sm:$0xff]
    %v255 = vld [vmem:[#allocation3 + $0x60] sm:$0xff]
    %v256 = vld [vmem:[#allocation3 + $0x68] sm:$0xff]
    %v257 = vld [vmem:[#allocation3 + $0x70] sm:$0xff]
    %v258 = vld [vmem:[#allocation3 + $0x78] sm:$0xff]
    %v259 = vld [vmem:[#allocation3 + $0x80] sm:$0xff]
    %v260 = vld [vmem:[#allocation3 + $0x88] sm:$0xff]
    %v261 = vld [vmem:[#allocation3 + $0x90] sm:$0xff]
    %v262 = vld [vmem:[#allocation3 + $0x98] sm:$0xff]
    %v263 = vld [vmem:[#allocation3 + $0xa0] sm:$0xff]
    %v264 = vld [vmem:[#allocation3 + $0xa8] sm:$0xff]
    %v265 = vld [vmem:[#allocation3 + $0xb0] sm:$0xff]
    %v266 = vld [vmem:[#allocation3 + $0xb8] sm:$0xff]
    %v267 = vld [vmem:[#allocation3 + $0xc0] sm:$0xff]
    %v268 = vld [vmem:[#allocation3 + $0xc8] sm:$0xff]
    %v269 = vld [vmem:[#allocation3 + $0xd0] sm:$0xff]
    %v270 = vld [vmem:[#allocation3 + $0xd8] sm:$0xff]
    %v271 = vld [vmem:[#allocation3 + $0xe0] sm:$0xff]
    %v272 = vld [vmem:[#allocation3 + $0xe8] sm:$0xff]
    %v273 = vld [vmem:[#allocation3 + $0xf0] sm:$0xff]
    %v274 = vld [vmem:[#allocation3 + $0xf8] sm:$0xff]
    %v307 = vunpack.c.l.b16 %v243
    %v308 = vunpack.c.h.b16 %v243
    %v309 = vunpack.c.l.b16 %v244
    %v310 = vunpack.c.h.b16 %v244
    %v311 = vunpack.c.l.b16 %v245
    %v312 = vunpack.c.h.b16 %v245
    %v313 = vunpack.c.l.b16 %v246
    %v314 = vunpack.c.h.b16 %v246
    %v315 = vunpack.c.l.b16 %v247
    %v316 = vunpack.c.h.b16 %v247
    %v317 = vunpack.c.l.b16 %v248
    %v318 = vunpack.c.h.b16 %v248
    %v319 = vunpack.c.l.b16 %v249
    %v320 = vunpack.c.h.b16 %v249
    %v321 = vunpack.c.l.b16 %v250
    %v322 = vunpack.c.h.b16 %v250
    %v323 = vunpack.c.l.b16 %v251
    %v324 = vunpack.c.h.b16 %v251
    %v325 = vunpack.c.l.b16 %v252
    %v326 = vunpack.c.h.b16 %v252
    %v327 = vunpack.c.l.b16 %v253
    %v328 = vunpack.c.h.b16 %v253
    %v329 = vunpack.c.l.b16 %v254
    %v330 = vunpack.c.h.b16 %v254
    %v331 = vunpack.c.l.b16 %v255
    %v332 = vunpack.c.h.b16 %v255
    %v333 = vunpack.c.l.b16 %v256
    %v334 = vunpack.c.h.b16 %v256
    %v335 = vunpack.c.l.b16 %v257
    %v336 = vunpack.c.h.b16 %v257
    %v337 = vunpack.c.l.b16 %v258
    %v338 = vunpack.c.h.b16 %v258
    %v339 = vunpack.c.l.b16 %v259
    %v340 = vunpack.c.h.b16 %v259
    %v341 = vunpack.c.l.b16 %v260
    %v342 = vunpack.c.h.b16 %v260
    %v343 = vunpack.c.l.b16 %v261
    %v344 = vunpack.c.h.b16 %v261
    %v345 = vunpack.c.l.b16 %v262
    %v346 = vunpack.c.h.b16 %v262
    %v347 = vunpack.c.l.b16 %v263
    %v348 = vunpack.c.h.b16 %v263
    %v349 = vunpack.c.l.b16 %v264
    %v350 = vunpack.c.h.b16 %v264
    %v351 = vunpack.c.l.b16 %v265
    %v352 = vunpack.c.h.b16 %v265
    %v353 = vunpack.c.l.b16 %v266
    %v354 = vunpack.c.h.b16 %v266
    %v355 = vunpack.c.l.b16 %v267
    %v356 = vunpack.c.h.b16 %v267
    %v357 = vunpack.c.l.b16 %v268
    %v358 = vunpack.c.h.b16 %v268
    %v359 = vunpack.c.l.b16 %v269
    %v360 = vunpack.c.h.b16 %v269
    %v361 = vunpack.c.l.b16 %v270
    %v362 = vunpack.c.h.b16 %v270
    %v363 = vunpack.c.l.b16 %v271
    %v364 = vunpack.c.h.b16 %v271
    %v365 = vunpack.c.l.b16 %v272
    %v366 = vunpack.c.h.b16 %v272
    %v367 = vunpack.c.l.b16 %v273
    %v368 = vunpack.c.h.b16 %v273
    %v369 = vunpack.c.l.b16 %v274
    %v370 = vunpack.c.h.b16 %v274
    %v371 = vpack.c.b16 %v311, %v307
    %v372 = vpack.c.b16 %v312, %v308
    %v373 = vpack.c.b16 %v313, %v309
    %v374 = vpack.c.b16 %v314, %v310
    %v375 = vpack.c.b16 %v319, %v315
    %v376 = vpack.c.b16 %v320, %v316
    %v377 = vpack.c.b16 %v321, %v317
    %v378 = vpack.c.b16 %v322, %v318
    %v379 = vpack.c.b16 %v327, %v323
    %v380 = vpack.c.b16 %v328, %v324
    %v381 = vpack.c.b16 %v329, %v325
    %v382 = vpack.c.b16 %v330, %v326
    %v383 = vpack.c.b16 %v335, %v331
    %v384 = vpack.c.b16 %v336, %v332
    %v385 = vpack.c.b16 %v337, %v333
    %v386 = vpack.c.b16 %v338, %v334
    %v387 = vpack.c.b16 %v343, %v339
    %v388 = vpack.c.b16 %v344, %v340
    %v389 = vpack.c.b16 %v345, %v341
    %v390 = vpack.c.b16 %v346, %v342
    %v391 = vpack.c.b16 %v351, %v347
    %v392 = vpack.c.b16 %v352, %v348
    %v393 = vpack.c.b16 %v353, %v349
    %v394 = vpack.c.b16 %v354, %v350
    %v395 = vpack.c.b16 %v359, %v355
    %v396 = vpack.c.b16 %v360, %v356
    %v397 = vpack.c.b16 %v361, %v357
    %v398 = vpack.c.b16 %v362, %v358
    %v399 = vpack.c.b16 %v367, %v363
    %v400 = vpack.c.b16 %v368, %v364
    %v401 = vpack.c.b16 %v369, %v365
    %v402 = vpack.c.b16 %v370, %v366
    %435 = vmatprep.subr.bf16.mxu0 %v372
    %436 = vmatpush1.bf16.msra.mxu0 %v371
    %437 = vmatprep.subr.bf16.mxu0 %v376
    %438 = vmatpush1.bf16.msra.mxu0 %v375
    %439 = vmatprep.subr.bf16.mxu0 %v380
    %440 = vmatpush1.bf16.msra.mxu0 %v379
    %441 = vmatprep.subr.bf16.mxu0 %v384
    %442 = vmatpush1.bf16.msra.mxu0 %v383
    %443 = vmatprep.subr.bf16.mxu0 %v388
    %444 = vmatpush1.bf16.msra.mxu0 %v387
    %445 = vmatprep.subr.bf16.mxu0 %v392
    %446 = vmatpush1.bf16.msra.mxu0 %v391
    %447 = vmatprep.subr.bf16.mxu0 %v396
    %448 = vmatpush1.bf16.msra.mxu0 %v395
    %449 = vmatprep.subr.bf16.mxu0 %v400
    %450 = vmatpush1.bf16.msra.mxu0 %v399
    %451 = vmatprep.subr.bf16.mxu0 0
    %452 = vmatpush1.bf16.msra.mxu0 0
    %453 = vmatprep.subr.bf16.mxu0 0
    %454 = vmatpush1.bf16.msra.mxu0 0
    %455 = vmatprep.subr.bf16.mxu0 0
    %456 = vmatpush1.bf16.msra.mxu0 0
    %457 = vmatprep.subr.bf16.mxu0 0
    %458 = vmatpush1.bf16.msra.mxu0 0
    %459 = vmatprep.subr.bf16.mxu0 0
    %460 = vmatpush1.bf16.msra.mxu0 0
    %461 = vmatprep.subr.bf16.mxu0 0
    %462 = vmatpush1.bf16.msra.mxu0 0
    %463 = vmatprep.subr.bf16.mxu0 0
    %464 = vmatpush1.bf16.msra.mxu0 0
    %465 = vmatprep.subr.bf16.mxu0 0
    %466 = vmatpush1.bf16.msra.mxu0 0
    %467 = vmatprep.mubr.bf16.mxu0 0
    %468 = vmatmul.mubr.bf16.gmra.mrb[0].mxu0 %v237
    %v469 = vpop.f32.mrb[0].mxu0
    %v470 = vadd.f32 0.0, %v469
    %v471 = vpop.f32.mrb[0].mxu0
    %v472 = vadd.f32 0.0, %v471
    %v473 = vpop.f32.mrb[0].mxu0
    %v474 = vpop.f32.mrb[0].mxu0
    %475 = vdwg.mxu0
    %476 = vmatprep.subr.bf16.mxu0 %v374
    %477 = vmatpush1.bf16.msra.mxu0 %v373
    %478 = vmatprep.subr.bf16.mxu0 %v378
    %479 = vmatpush1.bf16.msra.mxu0 %v377
    %480 = vmatprep.subr.bf16.mxu0 %v382
    %481 = vmatpush1.bf16.msra.mxu0 %v381
    %482 = vmatprep.subr.bf16.mxu0 %v386
    %483 = vmatpush1.bf16.msra.mxu0 %v385
    %484 = vmatprep.subr.bf16.mxu0 %v390
    %485 = vmatpush1.bf16.msra.mxu0 %v389
    %486 = vmatprep.subr.bf16.mxu0 %v394
    %487 = vmatpush1.bf16.msra.mxu0 %v393
    %488 = vmatprep.subr.bf16.mxu0 %v398
    %489 = vmatpush1.bf16.msra.mxu0 %v397
    %490 = vmatprep.subr.bf16.mxu0 %v402
    %491 = vmatpush1.bf16.msra.mxu0 %v401
    %492 = vmatprep.subr.bf16.mxu0 0
    %493 = vmatpush1.bf16.msra.mxu0 0
    %494 = vmatprep.subr.bf16.mxu0 0
    %495 = vmatpush1.bf16.msra.mxu0 0
    %496 = vmatprep.subr.bf16.mxu0 0
    %497 = vmatpush1.bf16.msra.mxu0 0
    %498 = vmatprep.subr.bf16.mxu0 0
    %499 = vmatpush1.bf16.msra.mxu0 0
    %500 = vmatprep.subr.bf16.mxu0 0
    %501 = vmatpush1.bf16.msra.mxu0 0
    %502 = vmatprep.subr.bf16.mxu0 0
    %503 = vmatpush1.bf16.msra.mxu0 0
    %504 = vmatprep.subr.bf16.mxu0 0
    %505 = vmatpush1.bf16.msra.mxu0 0
    %506 = vmatprep.subr.bf16.mxu0 0
    %507 = vmatpush1.bf16.msra.mxu0 0
    %508 = vmatprep.mubr.bf16.mxu0 0
    %509 = vmatmul.mubr.bf16.gmra.mrb[0].mxu0 %v237
    %v510 = vpop.f32.mrb[0].mxu0
    %v511 = vadd.f32 0.0, %v510
    %v512 = vpop.f32.mrb[0].mxu0
    %v513 = vadd.f32 0.0, %v512
    %v514 = vpop.f32.mrb[0].mxu0
    %v515 = vpop.f32.mrb[0].mxu0
    %516 = vdwg.mxu0
    %v517 = vadd.f32 %v239, %v470
    %v518 = vadd.f32 %v240, %v472
    %v519 = vadd.f32 %v241, %v511
    %v520 = vadd.f32 %v242, %v513
    %v521 = vpack.c.bf16 %v517, %v517
    %v522 = vpack.c.bf16 %v518, %v518
    %v523 = vpack.c.bf16 %v519, %v519
    %v524 = vtanh.bf16.pop %v521
    %v525 = vtanh.bf16.pop %v522
    %v526 = vtanh.bf16.pop %v523
    %v527 = vmul.bf16 %v524, 1056980736
    %v528 = vmul.bf16 %v525, 1056980736
    %v529 = vmul.bf16 %v526, 1056980736
    %v530 = vadd.bf16 %v527, 1056980736
    %v531 = vadd.bf16 %v528, 1056980736
    %v532 = vadd.bf16 %v529, 1056980736
    %v533 = vpack.c.bf16 %v520, %v520
    %v534 = vtanh.bf16.pop %v533
    %v535 = vunpack.c.l.bf16 %v531
    %v536 = vmul.f32 %v535, %v238
    %v537 = vmul.bf16 %v530, %v534
    %v538 = vunpack.c.l.bf16 %v537
    %v539 = vadd.f32 %v536, %v538
    %v540 = vpack.c.bf16 %v539, %v539
    %v541 = vtanh.bf16.pop %v540
    %v542 = vmul.bf16 %v532, %v541
    %v543 = vld [vmem:[#allocation2 + $0x20] sm:$0xff]
    %v544 = vld [vmem:[#allocation2 + $0x28] sm:$0xff]
    %v545 = vld [vmem:[#allocation2 + $0x30] sm:$0xff]
    %v546 = vld [vmem:[#allocation2 + $0x38] sm:$0xff]
    %547 = vmatprep.subr.bf16.mxu0 %v372
    %548 = vmatpush1.bf16.msra.mxu0 %v371
    %549 = vmatprep.subr.bf16.mxu0 %v376
    %550 = vmatpush1.bf16.msra.mxu0 %v375
    %551 = vmatprep.subr.bf16.mxu0 %v380
    %552 = vmatpush1.bf16.msra.mxu0 %v379
    %553 = vmatprep.subr.bf16.mxu0 %v384
    %554 = vmatpush1.bf16.msra.mxu0 %v383
    %555 = vmatprep.subr.bf16.mxu0 %v388
    %556 = vmatpush1.bf16.msra.mxu0 %v387
    %557 = vmatprep.subr.bf16.mxu0 %v392
    %558 = vmatpush1.bf16.msra.mxu0 %v391
    %559 = vmatprep.subr.bf16.mxu0 %v396
    %560 = vmatpush1.bf16.msra.mxu0 %v395
    %561 = vmatprep.subr.bf16.mxu0 %v400
    %562 = vmatpush1.bf16.msra.mxu0 %v399
    %563 = vmatprep.subr.bf16.mxu0 0
    %564 = vmatpush1.bf16.msra.mxu0 0
    %565 = vmatprep.subr.bf16.mxu0 0
    %566 = vmatpush1.bf16.msra.mxu0 0
    %567 = vmatprep.subr.bf16.mxu0 0
    %568 = vmatpush1.bf16.msra.mxu0 0
    %569 = vmatprep.subr.bf16.mxu0 0
    %570 = vmatpush1.bf16.msra.mxu0 0
    %571 = vmatprep.subr.bf16.mxu0 0
    %572 = vmatpush1.bf16.msra.mxu0 0
    %573 = vmatprep.subr.bf16.mxu0 0
    %574 = vmatpush1.bf16.msra.mxu0 0
    %575 = vmatprep.subr.bf16.mxu0 0
    %576 = vmatpush1.bf16.msra.mxu0 0
    %577 = vmatprep.subr.bf16.mxu0 0
    %578 = vmatpush1.bf16.msra.mxu0 0
    %579 = vmatprep.mubr.bf16.mxu0 0
    %580 = vmatmul.mubr.bf16.gmra.mrb[0].mxu0 %v542
    %v581 = vpop.f32.mrb[0].mxu0
    %v582 = vadd.f32 0.0, %v581
    %v583 = vpop.f32.mrb[0].mxu0
    %v584 = vadd.f32 0.0, %v583
    %v585 = vpop.f32.mrb[0].mxu0
    %v586 = vpop.f32.mrb[0].mxu0
    %587 = vdwg.mxu0
    %588 = vmatprep.subr.bf16.mxu0 %v374
    %589 = vmatpush1.bf16.msra.mxu0 %v373
    %590 = vmatprep.subr.bf16.mxu0 %v378
    %591 = vmatpush1.bf16.msra.mxu0 %v377
    %592 = vmatprep.subr.bf16.mxu0 %v382
    %593 = vmatpush1.bf16.msra.mxu0 %v381
    %594 = vmatprep.subr.bf16.mxu0 %v386
    %595 = vmatpush1.bf16.msra.mxu0 %v385
    %596 = vmatprep.subr.bf16.mxu0 %v390
    %597 = vmatpush1.bf16.msra.mxu0 %v389
    %598 = vmatprep.subr.bf16.mxu0 %v394
    %599 = vmatpush1.bf16.msra.mxu0 %v393
    %600 = vmatprep.subr.bf16.mxu0 %v398
    %601 = vmatpush1.bf16.msra.mxu0 %v397
    %602 = vmatprep.subr.bf16.mxu0 %v402
    %603 = vmatpush1.bf16.msra.mxu0 %v401
    %604 = vmatprep.subr.bf16.mxu0 0
    %605 = vmatpush1.bf16.msra.mxu0 0
    %606 = vmatprep.subr.bf16.mxu0 0
    %607 = vmatpush1.bf16.msra.mxu0 0
    %608 = vmatprep.subr.bf16.mxu0 0
    %609 = vmatpush1.bf16.msra.mxu0 0
    %610 = vmatprep.subr.bf16.mxu0 0
    %611 = vmatpush1.bf16.msra.mxu0 0
    %612 = vmatprep.subr.bf16.mxu0 0
    %613 = vmatpush1.bf16.msra.mxu0 0
    %614 = vmatprep.subr.bf16.mxu0 0
    %615 = vmatpush1.bf16.msra.mxu0 0
    %616 = vmatprep.subr.bf16.mxu0 0
    %617 = vmatpush1.bf16.msra.mxu0 0
    %618 = vmatprep.subr.bf16.mxu0 0
    %619 = vmatpush1.bf16.msra.mxu0 0
    %620 = vmatprep.mubr.bf16.mxu0 0
    %621 = vmatmul.mubr.bf16.gmra.mrb[0].mxu0 %v542
    %v622 = vpop.f32.mrb[0].mxu0
    %v623 = vadd.f32 0.0, %v622
    %v624 = vpop.f32.mrb[0].mxu0
    %v625 = vadd.f32 0.0, %v624
    %v626 = vpop.f32.mrb[0].mxu0
    %v627 = vpop.f32.mrb[0].mxu0
    %628 = vdwg.mxu0
    %v629 = vadd.f32 %v543, %v582
    %v630 = vadd.f32 %v544, %v584
    %v631 = vadd.f32 %v545, %v623
    %v632 = vadd.f32 %v546, %v625
    %v633 = vpack.c.bf16 %v629, %v629
    %v634 = vpack.c.bf16 %v630, %v630
    %v635 = vpack.c.bf16 %v631, %v631
    %v636 = vtanh.bf16.pop %v633
    %v637 = vtanh.bf16.pop %v634
    %v638 = vtanh.bf16.pop %v635
    %v639 = vmul.bf16 %v636, 1056980736
    %v640 = vmul.bf16 %v637, 1056980736
    %v641 = vmul.bf16 %v638, 1056980736
    %v642 = vadd.bf16 %v639, 1056980736
    %v643 = vadd.bf16 %v640, 1056980736
    %v644 = vadd.bf16 %v641, 1056980736
    %v645 = vpack.c.bf16 %v632, %v632
    %v646 = vtanh.bf16.pop %v645
    %v647 = vunpack.c.l.bf16 %v643
    %v648 = vmul.f32 %v647, %v539
    %v649 = vmul.bf16 %v642, %v646
    %v650 = vunpack.c.l.bf16 %v649
    %v651 = vadd.f32 %v648, %v650
    %v652 = vpack.c.bf16 %v651, %v651
    %v653 = vtanh.bf16.pop %v652
    %v654 = vmul.bf16 %v644, %v653
    %v655 = vld [vmem:[#allocation2 + $0x40] sm:$0xff]
    %v656 = vld [vmem:[#allocation2 + $0x48] sm:$0xff]
    %v657 = vld [vmem:[#allocation2 + $0x50] sm:$0xff]
    %v658 = vld [vmem:[#allocation2 + $0x58] sm:$0xff]
    %659 = vmatprep.subr.bf16.mxu0 %v372
    %660 = vmatpush1.bf16.msra.mxu0 %v371
    %661 = vmatprep.subr.bf16.mxu0 %v376
    %662 = vmatpush1.bf16.msra.mxu0 %v375
    %663 = vmatprep.subr.bf16.mxu0 %v380
    %664 = vmatpush1.bf16.msra.mxu0 %v379
    %665 = vmatprep.subr.bf16.mxu0 %v384
    %666 = vmatpush1.bf16.msra.mxu0 %v383
    %667 = vmatprep.subr.bf16.mxu0 %v388
    %668 = vmatpush1.bf16.msra.mxu0 %v387
    %669 = vmatprep.subr.bf16.mxu0 %v392
    %670 = vmatpush1.bf16.msra.mxu0 %v391
    %671 = vmatprep.subr.bf16.mxu0 %v396
    %672 = vmatpush1.bf16.msra.mxu0 %v395
    %673 = vmatprep.subr.bf16.mxu0 %v400
    %674 = vmatpush1.bf16.msra.mxu0 %v399
    %675 = vmatprep.subr.bf16.mxu0 0
    %676 = vmatpush1.bf16.msra.mxu0 0
    %677 = vmatprep.subr.bf16.mxu0 0
    %678 = vmatpush1.bf16.msra.mxu0 0
    %679 = vmatprep.subr.bf16.mxu0 0
    %680 = vmatpush1.bf16.msra.mxu0 0
    %681 = vmatprep.subr.bf16.mxu0 0
    %682 = vmatpush1.bf16.msra.mxu0 0
    %683 = vmatprep.subr.bf16.mxu0 0
    %684 = vmatpush1.bf16.msra.mxu0 0
    %685 = vmatprep.subr.bf16.mxu0 0
    %686 = vmatpush1.bf16.msra.mxu0 0
    %687 = vmatprep.subr.bf16.mxu0 0
    %688 = vmatpush1.bf16.msra.mxu0 0
    %689 = vmatprep.subr.bf16.mxu0 0
    %690 = vmatpush1.bf16.msra.mxu0 0
    %691 = vmatprep.mubr.bf16.mxu0 0
    %692 = vmatmul.mubr.bf16.gmra.mrb[0].mxu0 %v654
    %v693 = vpop.f32.mrb[0].mxu0
    %v694 = vadd.f32 0.0, %v693
    %v695 = vpop.f32.mrb[0].mxu0
    %v696 = vadd.f32 0.0, %v695
    %v697 = vpop.f32.mrb[0].mxu0
    %v698 = vpop.f32.mrb[0].mxu0
    %699 = vdwg.mxu0
    %700 = vmatprep.subr.bf16.mxu0 %v374
    %701 = vmatpush1.bf16.msra.mxu0 %v373
    %702 = vmatprep.subr.bf16.mxu0 %v378
    %703 = vmatpush1.bf16.msra.mxu0 %v377
    %704 = vmatprep.subr.bf16.mxu0 %v382
    %705 = vmatpush1.bf16.msra.mxu0 %v381
    %706 = vmatprep.subr.bf16.mxu0 %v386
    %707 = vmatpush1.bf16.msra.mxu0 %v385
    %708 = vmatprep.subr.bf16.mxu0 %v390
    %709 = vmatpush1.bf16.msra.mxu0 %v389
    %710 = vmatprep.subr.bf16.mxu0 %v394
    %711 = vmatpush1.bf16.msra.mxu0 %v393
    %712 = vmatprep.subr.bf16.mxu0 %v398
    %713 = vmatpush1.bf16.msra.mxu0 %v397
    %714 = vmatprep.subr.bf16.mxu0 %v402
    %715 = vmatpush1.bf16.msra.mxu0 %v401
    %716 = vmatprep.subr.bf16.mxu0 0
    %717 = vmatpush1.bf16.msra.mxu0 0
    %718 = vmatprep.subr.bf16.mxu0 0
    %719 = vmatpush1.bf16.msra.mxu0 0
    %720 = vmatprep.subr.bf16.mxu0 0
    %721 = vmatpush1.bf16.msra.mxu0 0
    %722 = vmatprep.subr.bf16.mxu0 0
    %723 = vmatpush1.bf16.msra.mxu0 0
    %724 = vmatprep.subr.bf16.mxu0 0
    %725 = vmatpush1.bf16.msra.mxu0 0
    %726 = vmatprep.subr.bf16.mxu0 0
    %727 = vmatpush1.bf16.msra.mxu0 0
    %728 = vmatprep.subr.bf16.mxu0 0
    %729 = vmatpush1.bf16.msra.mxu0 0
    %730 = vmatprep.subr.bf16.mxu0 0
    %731 = vmatpush1.bf16.msra.mxu0 0
    %732 = vmatprep.mubr.bf16.mxu0 0
    %733 = vmatmul.mubr.bf16.gmra.mrb[0].mxu0 %v654
    %v734 = vpop.f32.mrb[0].mxu0
    %v735 = vadd.f32 0.0, %v734
    %v736 = vpop.f32.mrb[0].mxu0
    %v737 = vadd.f32 0.0, %v736
    %v738 = vpop.f32.mrb[0].mxu0
    %v739 = vpop.f32.mrb[0].mxu0
    %740 = vdwg.mxu0
    %v741 = vadd.f32 %v655, %v694
    %v742 = vadd.f32 %v656, %v696
    %v743 = vadd.f32 %v657, %v735
    %v744 = vadd.f32 %v658, %v737
    %v745 = vpack.c.bf16 %v741, %v741
    %v746 = vpack.c.bf16 %v742, %v742
    %v747 = vpack.c.bf16 %v743, %v743
    %v748 = vtanh.bf16.pop %v745
    %v749 = vtanh.bf16.pop %v746
    %v750 = vtanh.bf16.pop %v747
    %v751 = vmul.bf16 %v748, 1056980736
    %v752 = vmul.bf16 %v749, 1056980736
    %v753 = vmul.bf16 %v750, 1056980736
    %v754 = vadd.bf16 %v751, 1056980736
    %v755 = vadd.bf16 %v752, 1056980736
    %v756 = vadd.bf16 %v753, 1056980736
    %v757 = vpack.c.bf16 %v744, %v744
    %v758 = vtanh.bf16.pop %v757
    %v759 = vunpack.c.l.bf16 %v755
    %v760 = vmul.f32 %v759, %v651
    %v761 = vmul.bf16 %v754, %v758
    %v762 = vunpack.c.l.bf16 %v761
    %v763 = vadd.f32 %v760, %v762
    %v764 = vpack.c.bf16 %v763, %v763
    %v765 = vtanh.bf16.pop %v764
    %v766 = vmul.bf16 %v756, %v765
    %v767 = vld [vmem:[#allocation2 + $0x60] sm:$0xff]
    %v768 = vld [vmem:[#allocation2 + $0x68] sm:$0xff]
    %v769 = vld [vmem:[#allocation2 + $0x70] sm:$0xff]
    %v770 = vld [vmem:[#allocation2 + $0x78] sm:$0xff]
    %771 = vmatprep.subr.bf16.mxu0 %v372
    %772 = vmatpush1.bf16.msra.mxu0 %v371
    %773 = vmatprep.subr.bf16.mxu0 %v376
    %774 = vmatpush1.bf16.msra.mxu0 %v375
    %775 = vmatprep.subr.bf16.mxu0 %v380
    %776 = vmatpush1.bf16.msra.mxu0 %v379
    %777 = vmatprep.subr.bf16.mxu0 %v384
    %778 = vmatpush1.bf16.msra.mxu0 %v383
    %779 = vmatprep.subr.bf16.mxu0 %v388
    %780 = vmatpush1.bf16.msra.mxu0 %v387
    %781 = vmatprep.subr.bf16.mxu0 %v392
    %782 = vmatpush1.bf16.msra.mxu0 %v391
    %783 = vmatprep.subr.bf16.mxu0 %v396
    %784 = vmatpush1.bf16.msra.mxu0 %v395
    %785 = vmatprep.subr.bf16.mxu0 %v400
    %786 = vmatpush1.bf16.msra.mxu0 %v399
    %787 = vmatprep.subr.bf16.mxu0 0
    %788 = vmatpush1.bf16.msra.mxu0 0
    %789 = vmatprep.subr.bf16.mxu0 0
    %790 = vmatpush1.bf16.msra.mxu0 0
    %791 = vmatprep.subr.bf16.mxu0 0
    %792 = vmatpush1.bf16.msra.mxu0 0
    %793 = vmatprep.subr.bf16.mxu0 0
    %794 = vmatpush1.bf16.msra.mxu0 0
    %795 = vmatprep.subr.bf16.mxu0 0
    %796 = vmatpush1.bf16.msra.mxu0 0
    %797 = vmatprep.subr.bf16.mxu0 0
    %798 = vmatpush1.bf16.msra.mxu0 0
    %799 = vmatprep.subr.bf16.mxu0 0
    %800 = vmatpush1.bf16.msra.mxu0 0
    %801 = vmatprep.subr.bf16.mxu0 0
    %802 = vmatpush1.bf16.msra.mxu0 0
    %803 = vmatprep.mubr.bf16.mxu0 0
    %804 = vmatmul.mubr.bf16.gmra.mrb[0].mxu0 %v766
    %v805 = vpop.f32.mrb[0].mxu0
    %v806 = vadd.f32 0.0, %v805
    %v807 = vpop.f32.mrb[0].mxu0
    %v808 = vadd.f32 0.0, %v807
    %v809 = vpop.f32.mrb[0].mxu0
    %v810 = vpop.f32.mrb[0].mxu0
    %811 = vdwg.mxu0
    %812 = vmatprep.subr.bf16.mxu0 %v374
    %813 = vmatpush1.bf16.msra.mxu0 %v373
    %814 = vmatprep.subr.bf16.mxu0 %v378
    %815 = vmatpush1.bf16.msra.mxu0 %v377
    %816 = vmatprep.subr.bf16.mxu0 %v382
    %817 = vmatpush1.bf16.msra.mxu0 %v381
    %818 = vmatprep.subr.bf16.mxu0 %v386
    %819 = vmatpush1.bf16.msra.mxu0 %v385
    %820 = vmatprep.subr.bf16.mxu0 %v390
    %821 = vmatpush1.bf16.msra.mxu0 %v389
    %822 = vmatprep.subr.bf16.mxu0 %v394
    %823 = vmatpush1.bf16.msra.mxu0 %v393
    %824 = vmatprep.subr.bf16.mxu0 %v398
    %825 = vmatpush1.bf16.msra.mxu0 %v397
    %826 = vmatprep.subr.bf16.mxu0 %v402
    %827 = vmatpush1.bf16.msra.mxu0 %v401
    %828 = vmatprep.subr.bf16.mxu0 0
    %829 = vmatpush1.bf16.msra.mxu0 0
    %830 = vmatprep.subr.bf16.mxu0 0
    %831 = vmatpush1.bf16.msra.mxu0 0
    %832 = vmatprep.subr.bf16.mxu0 0
    %833 = vmatpush1.bf16.msra.mxu0 0
    %834 = vmatprep.subr.bf16.mxu0 0
    %835 = vmatpush1.bf16.msra.mxu0 0
    %836 = vmatprep.subr.bf16.mxu0 0
    %837 = vmatpush1.bf16.msra.mxu0 0
    %838 = vmatprep.subr.bf16.mxu0 0
    %839 = vmatpush1.bf16.msra.mxu0 0
    %840 = vmatprep.subr.bf16.mxu0 0
    %841 = vmatpush1.bf16.msra.mxu0 0
    %842 = vmatprep.subr.bf16.mxu0 0
    %843 = vmatpush1.bf16.msra.mxu0 0
    %844 = vmatprep.mubr.bf16.mxu0 0
    %845 = vmatmul.mubr.bf16.gmra.mrb[0].mxu0 %v766
    %v846 = vpop.f32.mrb[0].mxu0
    %v847 = vadd.f32 0.0, %v846
    %v848 = vpop.f32.mrb[0].mxu0
    %v849 = vadd.f32 0.0, %v848
    %v850 = vpop.f32.mrb[0].mxu0
    %v851 = vpop.f32.mrb[0].mxu0
    %852 = vdwg.mxu0
    %v853 = vadd.f32 %v767, %v806
    %v854 = vadd.f32 %v768, %v808
    %v855 = vadd.f32 %v769, %v847
    %v856 = vadd.f32 %v770, %v849
    %v857 = vpack.c.bf16 %v853, %v853
    %v858 = vpack.c.bf16 %v854, %v854
    %v859 = vpack.c.bf16 %v855, %v855
    %v860 = vtanh.bf16.pop %v857
    %v861 = vtanh.bf16.pop %v858
    %v862 = vtanh.bf16.pop %v859
    %v863 = vmul.bf16 %v860, 1056980736
    %v864 = vmul.bf16 %v861, 1056980736
    %v865 = vmul.bf16 %v862, 1056980736
    %v866 = vadd.bf16 %v863, 1056980736
    %v867 = vadd.bf16 %v864, 1056980736
    %v868 = vadd.bf16 %v865, 1056980736
    %v869 = vpack.c.bf16 %v856, %v856
    %v870 = vtanh.bf16.pop %v869
    %v871 = vunpack.c.l.bf16 %v867
    %v872 = vmul.f32 %v871, %v763
    %v873 = vmul.bf16 %v866, %v870
    %v874 = vunpack.c.l.bf16 %v873
    %v875 = vadd.f32 %v872, %v874
    %v876 = vpack.c.bf16 %v875, %v875
    %v877 = vtanh.bf16.pop %v876
    %v878 = vmul.bf16 %v868, %v877
    %v879 = vld [vmem:[#allocation2 + $0x80] sm:$0xff]
    %v880 = vld [vmem:[#allocation2 + $0x88] sm:$0xff]
    %v881 = vld [vmem:[#allocation2 + $0x90] sm:$0xff]
    %v882 = vld [vmem:[#allocation2 + $0x98] sm:$0xff]
    %883 = vmatprep.subr.bf16.mxu0 %v372
    %884 = vmatpush1.bf16.msra.mxu0 %v371
    %885 = vmatprep.subr.bf16.mxu0 %v376
    %886 = vmatpush1.bf16.msra.mxu0 %v375
    %887 = vmatprep.subr.bf16.mxu0 %v380
    %888 = vmatpush1.bf16.msra.mxu0 %v379
    %889 = vmatprep.subr.bf16.mxu0 %v384
    %890 = vmatpush1.bf16.msra.mxu0 %v383
    %891 = vmatprep.subr.bf16.mxu0 %v388
    %892 = vmatpush1.bf16.msra.mxu0 %v387
    %893 = vmatprep.subr.bf16.mxu0 %v392
    %894 = vmatpush1.bf16.msra.mxu0 %v391
    %895 = vmatprep.subr.bf16.mxu0 %v396
    %896 = vmatpush1.bf16.msra.mxu0 %v395
    %897 = vmatprep.subr.bf16.mxu0 %v400
    %898 = vmatpush1.bf16.msra.mxu0 %v399
    %899 = vmatprep.subr.bf16.mxu0 0
    %900 = vmatpush1.bf16.msra.mxu0 0
    %901 = vmatprep.subr.bf16.mxu0 0
    %902 = vmatpush1.bf16.msra.mxu0 0
    %903 = vmatprep.subr.bf16.mxu0 0
    %904 = vmatpush1.bf16.msra.mxu0 0
    %905 = vmatprep.subr.bf16.mxu0 0
    %906 = vmatpush1.bf16.msra.mxu0 0
    %907 = vmatprep.subr.bf16.mxu0 0
    %908 = vmatpush1.bf16.msra.mxu0 0
    %909 = vmatprep.subr.bf16.mxu0 0
    %910 = vmatpush1.bf16.msra.mxu0 0
    %911 = vmatprep.subr.bf16.mxu0 0
    %912 = vmatpush1.bf16.msra.mxu0 0
    %913 = vmatprep.subr.bf16.mxu0 0
    %914 = vmatpush1.bf16.msra.mxu0 0
    %915 = vmatprep.mubr.bf16.mxu0 0
    %916 = vmatmul.mubr.bf16.gmra.mrb[0].mxu0 %v878
    %v917 = vpop.f32.mrb[0].mxu0
    %v918 = vadd.f32 0.0, %v917
    %v919 = vpop.f32.mrb[0].mxu0
    %v920 = vadd.f32 0.0, %v919
    %v921 = vpop.f32.mrb[0].mxu0
    %v922 = vpop.f32.mrb[0].mxu0
    %923 = vdwg.mxu0
    %924 = vmatprep.subr.bf16.mxu0 %v374
    %925 = vmatpush1.bf16.msra.mxu0 %v373
    %926 = vmatprep.subr.bf16.mxu0 %v378
    %927 = vmatpush1.bf16.msra.mxu0 %v377
    %928 = vmatprep.subr.bf16.mxu0 %v382
    %929 = vmatpush1.bf16.msra.mxu0 %v381
    %930 = vmatprep.subr.bf16.mxu0 %v386
    %931 = vmatpush1.bf16.msra.mxu0 %v385
    %932 = vmatprep.subr.bf16.mxu0 %v390
    %933 = vmatpush1.bf16.msra.mxu0 %v389
    %934 = vmatprep.subr.bf16.mxu0 %v394
    %935 = vmatpush1.bf16.msra.mxu0 %v393
    %936 = vmatprep.subr.bf16.mxu0 %v398
    %937 = vmatpush1.bf16.msra.mxu0 %v397
    %938 = vmatprep.subr.bf16.mxu0 %v402
    %939 = vmatpush1.bf16.msra.mxu0 %v401
    %940 = vmatprep.subr.bf16.mxu0 0
    %941 = vmatpush1.bf16.msra.mxu0 0
    %942 = vmatprep.subr.bf16.mxu0 0
    %943 = vmatpush1.bf16.msra.mxu0 0
    %944 = vmatprep.subr.bf16.mxu0 0
    %945 = vmatpush1.bf16.msra.mxu0 0
    %946 = vmatprep.subr.bf16.mxu0 0
    %947 = vmatpush1.bf16.msra.mxu0 0
    %948 = vmatprep.subr.bf16.mxu0 0
    %949 = vmatpush1.bf16.msra.mxu0 0
    %950 = vmatprep.subr.bf16.mxu0 0
    %951 = vmatpush1.bf16.msra.mxu0 0
    %952 = vmatprep.subr.bf16.mxu0 0
    %953 = vmatpush1.bf16.msra.mxu0 0
    %954 = vmatprep.subr.bf16.mxu0 0
    %955 = vmatpush1.bf16.msra.mxu0 0
    %956 = vmatprep.mubr.bf16.mxu0 0
    %957 = vmatmul.mubr.bf16.gmra.mrb[0].mxu0 %v878
    %v958 = vpop.f32.mrb[0].mxu0
    %v959 = vadd.f32 0.0, %v958
    %v960 = vpop.f32.mrb[0].mxu0
    %v961 = vadd.f32 0.0, %v960
    %v962 = vpop.f32.mrb[0].mxu0
    %v963 = vpop.f32.mrb[0].mxu0
    %964 = vdwg.mxu0
    %v965 = vadd.f32 %v879, %v918
    %v966 = vadd.f32 %v880, %v920
    %v967 = vadd.f32 %v881, %v959
    %v968 = vadd.f32 %v882, %v961
    %v969 = vpack.c.bf16 %v965, %v965
    %v970 = vpack.c.bf16 %v966, %v966
    %v971 = vpack.c.bf16 %v967, %v967
    %v972 = vtanh.bf16.pop %v969
    %v973 = vtanh.bf16.pop %v970
    %v974 = vtanh.bf16.pop %v971
    %v975 = vmul.bf16 %v972, 1056980736
    %v976 = vmul.bf16 %v973, 1056980736
    %v977 = vmul.bf16 %v974, 1056980736
    %v978 = vadd.bf16 %v975, 1056980736
    %v979 = vadd.bf16 %v976, 1056980736
    %v980 = vadd.bf16 %v977, 1056980736
    %v981 = vpack.c.bf16 %v968, %v968
    %v982 = vtanh.bf16.pop %v981
    %v983 = vunpack.c.l.bf16 %v979
    %v984 = vmul.f32 %v983, %v875
    %v985 = vmul.bf16 %v978, %v982
    %v986 = vunpack.c.l.bf16 %v985
    %v987 = vadd.f32 %v984, %v986
    %v988 = vpack.c.bf16 %v987, %v987
    %v989 = vtanh.bf16.pop %v988
    %v990 = vmul.bf16 %v980, %v989
    %v991 = vld [vmem:[#allocation2 + $0xa0] sm:$0xff]
    %v992 = vld [vmem:[#allocation2 + $0xa8] sm:$0xff]
    %v993 = vld [vmem:[#allocation2 + $0xb0] sm:$0xff]
    %v994 = vld [vmem:[#allocation2 + $0xb8] sm:$0xff]
    %995 = vmatprep.subr.bf16.mxu0 %v372
    %996 = vmatpush1.bf16.msra.mxu0 %v371
    %997 = vmatprep.subr.bf16.mxu0 %v376
    %998 = vmatpush1.bf16.msra.mxu0 %v375
    %999 = vmatprep.subr.bf16.mxu0 %v380
    %1000 = vmatpush1.bf16.msra.mxu0 %v379
    %1001 = vmatprep.subr.bf16.mxu0 %v384
    %1002 = vmatpush1.bf16.msra.mxu0 %v383
    %1003 = vmatprep.subr.bf16.mxu0 %v388
    %1004 = vmatpush1.bf16.msra.mxu0 %v387
    %1005 = vmatprep.subr.bf16.mxu0 %v392
    %1006 = vmatpush1.bf16.msra.mxu0 %v391
    %1007 = vmatprep.subr.bf16.mxu0 %v396
    %1008 = vmatpush1.bf16.msra.mxu0 %v395
    %1009 = vmatprep.subr.bf16.mxu0 %v400
    %1010 = vmatpush1.bf16.msra.mxu0 %v399
    %1011 = vmatprep.subr.bf16.mxu0 0
    %1012 = vmatpush1.bf16.msra.mxu0 0
    %1013 = vmatprep.subr.bf16.mxu0 0
    %1014 = vmatpush1.bf16.msra.mxu0 0
    %1015 = vmatprep.subr.bf16.mxu0 0
    %1016 = vmatpush1.bf16.msra.mxu0 0
    %1017 = vmatprep.subr.bf16.mxu0 0
    %1018 = vmatpush1.bf16.msra.mxu0 0
    %1019 = vmatprep.subr.bf16.mxu0 0
    %1020 = vmatpush1.bf16.msra.mxu0 0
    %1021 = vmatprep.subr.bf16.mxu0 0
    %1022 = vmatpush1.bf16.msra.mxu0 0
    %1023 = vmatprep.subr.bf16.mxu0 0
    %1024 = vmatpush1.bf16.msra.mxu0 0
    %1025 = vmatprep.subr.bf16.mxu0 0
    %1026 = vmatpush1.bf16.msra.mxu0 0
    %1027 = vmatprep.mubr.bf16.mxu0 0
    %1028 = vmatmul.mubr.bf16.gmra.mrb[0].mxu0 %v990
    %v1029 = vpop.f32.mrb[0].mxu0
    %v1030 = vadd.f32 0.0, %v1029
    %v1031 = vpop.f32.mrb[0].mxu0
    %v1032 = vadd.f32 0.0, %v1031
    %v1033 = vpop.f32.mrb[0].mxu0
    %v1034 = vpop.f32.mrb[0].mxu0
    %1035 = vdwg.mxu0
    %1036 = vmatprep.subr.bf16.mxu0 %v374
    %1037 = vmatpush1.bf16.msra.mxu0 %v373
    %1038 = vmatprep.subr.bf16.mxu0 %v378
    %1039 = vmatpush1.bf16.msra.mxu0 %v377
    %1040 = vmatprep.subr.bf16.mxu0 %v382
    %1041 = vmatpush1.bf16.msra.mxu0 %v381
    %1042 = vmatprep.subr.bf16.mxu0 %v386
    %1043 = vmatpush1.bf16.msra.mxu0 %v385
    %1044 = vmatprep.subr.bf16.mxu0 %v390
    %1045 = vmatpush1.bf16.msra.mxu0 %v389
    %1046 = vmatprep.subr.bf16.mxu0 %v394
    %1047 = vmatpush1.bf16.msra.mxu0 %v393
    %1048 = vmatprep.subr.bf16.mxu0 %v398
    %1049 = vmatpush1.bf16.msra.mxu0 %v397
    %1050 = vmatprep.subr.bf16.mxu0 %v402
    %1051 = vmatpush1.bf16.msra.mxu0 %v401
    %1052 = vmatprep.subr.bf16.mxu0 0
    %1053 = vmatpush1.bf16.msra.mxu0 0
    %1054 = vmatprep.subr.bf16.mxu0 0
    %1055 = vmatpush1.bf16.msra.mxu0 0
    %1056 = vmatprep.subr.bf16.mxu0 0
    %1057 = vmatpush1.bf16.msra.mxu0 0
    %1058 = vmatprep.subr.bf16.mxu0 0
    %1059 = vmatpush1.bf16.msra.mxu0 0
    %1060 = vmatprep.subr.bf16.mxu0 0
    %1061 = vmatpush1.bf16.msra.mxu0 0
    %1062 = vmatprep.subr.bf16.mxu0 0
    %1063 = vmatpush1.bf16.msra.mxu0 0
    %1064 = vmatprep.subr.bf16.mxu0 0
    %1065 = vmatpush1.bf16.msra.mxu0 0
    %1066 = vmatprep.subr.bf16.mxu0 0
    %1067 = vmatpush1.bf16.msra.mxu0 0
    %1068 = vmatprep.mubr.bf16.mxu0 0
    %1069 = vmatmul.mubr.bf16.gmra.mrb[0].mxu0 %v990
    %v1070 = vpop.f32.mrb[0].mxu0
    %v1071 = vadd.f32 0.0, %v1070
    %v1072 = vpop.f32.mrb[0].mxu0
    %v1073 = vadd.f32 0.0, %v1072
    %v1074 = vpop.f32.mrb[0].mxu0
    %v1075 = vpop.f32.mrb[0].mxu0
    %1076 = vdwg.mxu0
    %v1077 = vadd.f32 %v991, %v1030
    %v1078 = vadd.f32 %v992, %v1032
    %v1079 = vadd.f32 %v993, %v1071
    %v1080 = vadd.f32 %v994, %v1073
    %v1081 = vpack.c.bf16 %v1077, %v1077
    %v1082 = vpack.c.bf16 %v1078, %v1078
    %v1083 = vpack.c.bf16 %v1079, %v1079
    %v1084 = vtanh.bf16.pop %v1081
    %v1085 = vtanh.bf16.pop %v1082
    %v1086 = vtanh.bf16.pop %v1083
    %v1087 = vmul.bf16 %v1084, 1056980736
    %v1088 = vmul.bf16 %v1085, 1056980736
    %v1089 = vmul.bf16 %v1086, 1056980736
    %v1090 = vadd.bf16 %v1087, 1056980736
    %v1091 = vadd.bf16 %v1088, 1056980736
    %v1092 = vadd.bf16 %v1089, 1056980736
    %v1093 = vpack.c.bf16 %v1080, %v1080
    %v1094 = vtanh.bf16.pop %v1093
    %v1095 = vunpack.c.l.bf16 %v1091
    %v1096 = vmul.f32 %v1095, %v987
    %v1097 = vmul.bf16 %v1090, %v1094
    %v1098 = vunpack.c.l.bf16 %v1097
    %v1099 = vadd.f32 %v1096, %v1098
    %v1100 = vpack.c.bf16 %v1099, %v1099
    %v1101 = vtanh.bf16.pop %v1100
    %v1102 = vmul.bf16 %v1092, %v1101
    %v1103 = vld [vmem:[#allocation2 + $0xc0] sm:$0xff]
    %v1104 = vld [vmem:[#allocation2 + $0xc8] sm:$0xff]
    %v1105 = vld [vmem:[#allocation2 + $0xd0] sm:$0xff]
    %v1106 = vld [vmem:[#allocation2 + $0xd8] sm:$0xff]
    %1107 = vmatprep.subr.bf16.mxu0 %v372
    %1108 = vmatpush1.bf16.msra.mxu0 %v371
    %1109 = vmatprep.subr.bf16.mxu0 %v376
    %1110 = vmatpush1.bf16.msra.mxu0 %v375
    %1111 = vmatprep.subr.bf16.mxu0 %v380
    %1112 = vmatpush1.bf16.msra.mxu0 %v379
    %1113 = vmatprep.subr.bf16.mxu0 %v384
    %1114 = vmatpush1.bf16.msra.mxu0 %v383
    %1115 = vmatprep.subr.bf16.mxu0 %v388
    %1116 = vmatpush1.bf16.msra.mxu0 %v387
    %1117 = vmatprep.subr.bf16.mxu0 %v392
    %1118 = vmatpush1.bf16.msra.mxu0 %v391
    %1119 = vmatprep.subr.bf16.mxu0 %v396
    %1120 = vmatpush1.bf16.msra.mxu0 %v395
    %1121 = vmatprep.subr.bf16.mxu0 %v400
    %1122 = vmatpush1.bf16.msra.mxu0 %v399
    %1123 = vmatprep.subr.bf16.mxu0 0
    %1124 = vmatpush1.bf16.msra.mxu0 0
    %1125 = vmatprep.subr.bf16.mxu0 0
    %1126 = vmatpush1.bf16.msra.mxu0 0
    %1127 = vmatprep.subr.bf16.mxu0 0
    %1128 = vmatpush1.bf16.msra.mxu0 0
    %1129 = vmatprep.subr.bf16.mxu0 0
    %1130 = vmatpush1.bf16.msra.mxu0 0
    %1131 = vmatprep.subr.bf16.mxu0 0
    %1132 = vmatpush1.bf16.msra.mxu0 0
    %1133 = vmatprep.subr.bf16.mxu0 0
    %1134 = vmatpush1.bf16.msra.mxu0 0
    %1135 = vmatprep.subr.bf16.mxu0 0
    %1136 = vmatpush1.bf16.msra.mxu0 0
    %1137 = vmatprep.subr.bf16.mxu0 0
    %1138 = vmatpush1.bf16.msra.mxu0 0
    %1139 = vmatprep.mubr.bf16.mxu0 0
    %1140 = vmatmul.mubr.bf16.gmra.mrb[0].mxu0 %v1102
    %v1141 = vpop.f32.mrb[0].mxu0
    %v1142 = vadd.f32 0.0, %v1141
    %v1143 = vpop.f32.mrb[0].mxu0
    %v1144 = vadd.f32 0.0, %v1143
    %v1145 = vpop.f32.mrb[0].mxu0
    %v1146 = vpop.f32.mrb[0].mxu0
    %1147 = vdwg.mxu0
    %1148 = vmatprep.subr.bf16.mxu0 %v374
    %1149 = vmatpush1.bf16.msra.mxu0 %v373
    %1150 = vmatprep.subr.bf16.mxu0 %v378
    %1151 = vmatpush1.bf16.msra.mxu0 %v377
    %1152 = vmatprep.subr.bf16.mxu0 %v382
    %1153 = vmatpush1.bf16.msra.mxu0 %v381
    %1154 = vmatprep.subr.bf16.mxu0 %v386
    %1155 = vmatpush1.bf16.msra.mxu0 %v385
    %1156 = vmatprep.subr.bf16.mxu0 %v390
    %1157 = vmatpush1.bf16.msra.mxu0 %v389
    %1158 = vmatprep.subr.bf16.mxu0 %v394
    %1159 = vmatpush1.bf16.msra.mxu0 %v393
    %1160 = vmatprep.subr.bf16.mxu0 %v398
    %1161 = vmatpush1.bf16.msra.mxu0 %v397
    %1162 = vmatprep.subr.bf16.mxu0 %v402
    %1163 = vmatpush1.bf16.msra.mxu0 %v401
    %1164 = vmatprep.subr.bf16.mxu0 0
    %1165 = vmatpush1.bf16.msra.mxu0 0
    %1166 = vmatprep.subr.bf16.mxu0 0
    %1167 = vmatpush1.bf16.msra.mxu0 0
    %1168 = vmatprep.subr.bf16.mxu0 0
    %1169 = vmatpush1.bf16.msra.mxu0 0
    %1170 = vmatprep.subr.bf16.mxu0 0
    %1171 = vmatpush1.bf16.msra.mxu0 0
    %1172 = vmatprep.subr.bf16.mxu0 0
    %1173 = vmatpush1.bf16.msra.mxu0 0
    %1174 = vmatprep.subr.bf16.mxu0 0
    %1175 = vmatpush1.bf16.msra.mxu0 0
    %1176 = vmatprep.subr.bf16.mxu0 0
    %1177 = vmatpush1.bf16.msra.mxu0 0
    %1178 = vmatprep.subr.bf16.mxu0 0
    %1179 = vmatpush1.bf16.msra.mxu0 0
    %1180 = vmatprep.mubr.bf16.mxu0 0
    %1181 = vmatmul.mubr.bf16.gmra.mrb[0].mxu0 %v1102
    %v1182 = vpop.f32.mrb[0].mxu0
    %v1183 = vadd.f32 0.0, %v1182
    %v1184 = vpop.f32.mrb[0].mxu0
    %v1185 = vadd.f32 0.0, %v1184
    %v1186 = vpop.f32.mrb[0].mxu0
    %v1187 = vpop.f32.mrb[0].mxu0
    %1188 = vdwg.mxu0
    %v1189 = vadd.f32 %v1103, %v1142
    %v1190 = vadd.f32 %v1104, %v1144
    %v1191 = vadd.f32 %v1105, %v1183
    %v1192 = vadd.f32 %v1106, %v1185
    %v1193 = vpack.c.bf16 %v1189, %v1189
    %v1194 = vpack.c.bf16 %v1190, %v1190
    %v1195 = vpack.c.bf16 %v1191, %v1191
    %v1196 = vtanh.bf16.pop %v1193
    %v1197 = vtanh.bf16.pop %v1194
    %v1198 = vtanh.bf16.pop %v1195
    %v1199 = vmul.bf16 %v1196, 1056980736
    %v1200 = vmul.bf16 %v1197, 1056980736
    %v1201 = vmul.bf16 %v1198, 1056980736
    %v1202 = vadd.bf16 %v1199, 1056980736
    %v1203 = vadd.bf16 %v1200, 1056980736
    %v1204 = vadd.bf16 %v1201, 1056980736
    %v1205 = vpack.c.bf16 %v1192, %v1192
    %v1206 = vtanh.bf16.pop %v1205
    %v1207 = vunpack.c.l.bf16 %v1203
    %v1208 = vmul.f32 %v1207, %v1099
    %v1209 = vmul.bf16 %v1202, %v1206
    %v1210 = vunpack.c.l.bf16 %v1209
    %v1211 = vadd.f32 %v1208, %v1210
    %v1212 = vpack.c.bf16 %v1211, %v1211
    %v1213 = vtanh.bf16.pop %v1212
    %v1214 = vmul.bf16 %v1204, %v1213
    %v1215 = vld [vmem:[#allocation2 + $0xe0] sm:$0xff]
    %v1216 = vld [vmem:[#allocation2 + $0xe8] sm:$0xff]
    %v1217 = vld [vmem:[#allocation2 + $0xf0] sm:$0xff]
    %v1218 = vld [vmem:[#allocation2 + $0xf8] sm:$0xff]
    %1219 = vmatprep.subr.bf16.mxu0 %v372
    %1220 = vmatpush1.bf16.msra.mxu0 %v371
    %1221 = vmatprep.subr.bf16.mxu0 %v376
    %1222 = vmatpush1.bf16.msra.mxu0 %v375
    %1223 = vmatprep.subr.bf16.mxu0 %v380
    %1224 = vmatpush1.bf16.msra.mxu0 %v379
    %1225 = vmatprep.subr.bf16.mxu0 %v384
    %1226 = vmatpush1.bf16.msra.mxu0 %v383
    %1227 = vmatprep.subr.bf16.mxu0 %v388
    %1228 = vmatpush1.bf16.msra.mxu0 %v387
    %1229 = vmatprep.subr.bf16.mxu0 %v392
    %1230 = vmatpush1.bf16.msra.mxu0 %v391
    %1231 = vmatprep.subr.bf16.mxu0 %v396
    %1232 = vmatpush1.bf16.msra.mxu0 %v395
    %1233 = vmatprep.subr.bf16.mxu0 %v400
    %1234 = vmatpush1.bf16.msra.mxu0 %v399
    %1235 = vmatprep.subr.bf16.mxu0 0
    %1236 = vmatpush1.bf16.msra.mxu0 0
    %1237 = vmatprep.subr.bf16.mxu0 0
    %1238 = vmatpush1.bf16.msra.mxu0 0
    %1239 = vmatprep.subr.bf16.mxu0 0
    %1240 = vmatpush1.bf16.msra.mxu0 0
    %1241 = vmatprep.subr.bf16.mxu0 0
    %1242 = vmatpush1.bf16.msra.mxu0 0
    %1243 = vmatprep.subr.bf16.mxu0 0
    %1244 = vmatpush1.bf16.msra.mxu0 0
    %1245 = vmatprep.subr.bf16.mxu0 0
    %1246 = vmatpush1.bf16.msra.mxu0 0
    %1247 = vmatprep.subr.bf16.mxu0 0
    %1248 = vmatpush1.bf16.msra.mxu0 0
    %1249 = vmatprep.subr.bf16.mxu0 0
    %1250 = vmatpush1.bf16.msra.mxu0 0
    %1251 = vmatprep.mubr.bf16.mxu0 0
    %1252 = vmatmul.mubr.bf16.gmra.mrb[0].mxu0 %v1214
    %v1253 = vpop.f32.mrb[0].mxu0
    %v1254 = vadd.f32 0.0, %v1253
    %v1255 = vpop.f32.mrb[0].mxu0
    %v1256 = vadd.f32 0.0, %v1255
    %v1257 = vpop.f32.mrb[0].mxu0
    %v1258 = vpop.f32.mrb[0].mxu0
    %1259 = vdwg.mxu0
    %1260 = vmatprep.subr.bf16.mxu0 %v374
    %1261 = vmatpush1.bf16.msra.mxu0 %v373
    %1262 = vmatprep.subr.bf16.mxu0 %v378
    %1263 = vmatpush1.bf16.msra.mxu0 %v377
    %1264 = vmatprep.subr.bf16.mxu0 %v382
    %1265 = vmatpush1.bf16.msra.mxu0 %v381
    %1266 = vmatprep.subr.bf16.mxu0 %v386
    %1267 = vmatpush1.bf16.msra.mxu0 %v385
    %1268 = vmatprep.subr.bf16.mxu0 %v390
    %1269 = vmatpush1.bf16.msra.mxu0 %v389
    %1270 = vmatprep.subr.bf16.mxu0 %v394
    %1271 = vmatpush1.bf16.msra.mxu0 %v393
    %1272 = vmatprep.subr.bf16.mxu0 %v398
    %1273 = vmatpush1.bf16.msra.mxu0 %v397
    %1274 = vmatprep.subr.bf16.mxu0 %v402
    %1275 = vmatpush1.bf16.msra.mxu0 %v401
    %1276 = vmatprep.subr.bf16.mxu0 0
    %1277 = vmatpush1.bf16.msra.mxu0 0
    %1278 = vmatprep.subr.bf16.mxu0 0
    %1279 = vmatpush1.bf16.msra.mxu0 0
    %1280 = vmatprep.subr.bf16.mxu0 0
    %1281 = vmatpush1.bf16.msra.mxu0 0
    %1282 = vmatprep.subr.bf16.mxu0 0
    %1283 = vmatpush1.bf16.msra.mxu0 0
    %1284 = vmatprep.subr.bf16.mxu0 0
    %1285 = vmatpush1.bf16.msra.mxu0 0
    %1286 = vmatprep.subr.bf16.mxu0 0
    %1287 = vmatpush1.bf16.msra.mxu0 0
    %1288 = vmatprep.subr.bf16.mxu0 0
    %1289 = vmatpush1.bf16.msra.mxu0 0
    %1290 = vmatprep.subr.bf16.mxu0 0
    %1291 = vmatpush1.bf16.msra.mxu0 0
    %1292 = vmatprep.mubr.bf16.mxu0 0
    %1293 = vmatmul.mubr.bf16.gmra.mrb[0].mxu0 %v1214
    %v1294 = vpop.f32.mrb[0].mxu0
    %v1295 = vadd.f32 0.0, %v1294
    %v1296 = vpop.f32.mrb[0].mxu0
    %v1297 = vadd.f32 0.0, %v1296
    %v1298 = vpop.f32.mrb[0].mxu0
    %v1299 = vpop.f32.mrb[0].mxu0
    %1300 = vdwg.mxu0
    %v1301 = vadd.f32 %v1215, %v1254
    %v1302 = vadd.f32 %v1216, %v1256
    %v1303 = vadd.f32 %v1217, %v1295
    %v1304 = vadd.f32 %v1218, %v1297
    %v1305 = vpack.c.bf16 %v1301, %v1301
    %v1306 = vpack.c.bf16 %v1302, %v1302
    %v1307 = vpack.c.bf16 %v1303, %v1303
    %v1308 = vtanh.bf16.pop %v1305
    %v1309 = vtanh.bf16.pop %v1306
    %v1310 = vtanh.bf16.pop %v1307
    %v1311 = vmul.bf16 %v1308, 1056980736
    %v1312 = vmul.bf16 %v1309, 1056980736
    %v1313 = vmul.bf16 %v1310, 1056980736
    %v1314 = vadd.bf16 %v1311, 1056980736
    %v1315 = vadd.bf16 %v1312, 1056980736
    %v1316 = vadd.bf16 %v1313, 1056980736
    %v1317 = vpack.c.bf16 %v1304, %v1304
    %v1318 = vtanh.bf16.pop %v1317
    %v1319 = vunpack.c.l.bf16 %v1315
    %v1320 = vmul.f32 %v1319, %v1211
    %v1321 = vmul.bf16 %v1314, %v1318
    %v1322 = vunpack.c.l.bf16 %v1321
    %v1323 = vadd.f32 %v1320, %v1322
    %v1324 = vpack.c.bf16 %v1323, %v1323
    %v1325 = vtanh.bf16.pop %v1324
    %v1326 = vmul.bf16 %v1316, %v1325
    %v1327 = vunpack.c.l.bf16 %v1326
    %1328 = vst [vmem:[%s9] sm:$0xff] %v1327
    %1329 = vst [vmem:[%s10] sm:$0xff] %v1323
    %v1330 = vld [vmem:[%s6] sm:$0xff]
    %v1331 = vld [vmem:[%s6 + $0x8] sm:$0xff]
    %v1332 = vld [vmem:[%s6 + $0x10] sm:$0xff]
    %v1333 = vld [vmem:[%s6 + $0x18] sm:$0xff]
    %v1334 = vld [vmem:[%s6 + $0x20] sm:$0xff]
    %v1335 = vld [vmem:[%s6 + $0x28] sm:$0xff]
    %v1336 = vld [vmem:[%s6 + $0x30] sm:$0xff]
    %v1337 = vld [vmem:[%s6 + $0x38] sm:$0xff]
    %v1338 = vld [vmem:[%s6 + $0x40] sm:$0xff]
    %v1339 = vld [vmem:[%s6 + $0x48] sm:$0xff]
    %v1340 = vld [vmem:[%s6 + $0x50] sm:$0xff]
    %v1341 = vld [vmem:[%s6 + $0x58] sm:$0xff]
    %v1342 = vld [vmem:[%s6 + $0x60] sm:$0xff]
    %v1343 = vld [vmem:[%s6 + $0x68] sm:$0xff]
    %v1344 = vld [vmem:[%s6 + $0x70] sm:$0xff]
    %v1345 = vld [vmem:[%s6 + $0x78] sm:$0xff]
    %v1346 = vld [vmem:[%s7] sm:$0x1]
    %v1348 = vlaneseq
    %v1349 = vshrl.u32 %v1348, 7
    %v1350 = vsub.s32 0, %v1349
    %v1351 = vrot.slane %v1346, %v1350
    %1353 = vmatprep.subr.mxu0 0.0
    %1354 = vmatpush1.msra.mxu0 %v1330
    %1355 = vmatprep.subr.mxu0 0.0
    %1356 = vmatpush1.msra.mxu0 %v1331
    %1357 = vmatprep.subr.mxu0 0.0
    %1358 = vmatpush1.msra.mxu0 %v1332
    %1359 = vmatprep.subr.mxu0 0.0
    %1360 = vmatpush1.msra.mxu0 %v1333
    %1361 = vmatprep.subr.mxu0 0.0
    %1362 = vmatpush1.msra.mxu0 %v1334
    %1363 = vmatprep.subr.mxu0 0.0
    %1364 = vmatpush1.msra.mxu0 %v1335
    %1365 = vmatprep.subr.mxu0 0.0
    %1366 = vmatpush1.msra.mxu0 %v1336
    %1367 = vmatprep.subr.mxu0 0.0
    %1368 = vmatpush1.msra.mxu0 %v1337
    %1369 = vmatprep.subr.mxu0 0.0
    %1370 = vmatpush1.msra.mxu0 %v1338
    %1371 = vmatprep.subr.mxu0 0.0
    %1372 = vmatpush1.msra.mxu0 %v1339
    %1373 = vmatprep.subr.mxu0 0.0
    %1374 = vmatpush1.msra.mxu0 %v1340
    %1375 = vmatprep.subr.mxu0 0.0
    %1376 = vmatpush1.msra.mxu0 %v1341
    %1377 = vmatprep.subr.mxu0 0.0
    %1378 = vmatpush1.msra.mxu0 %v1342
    %1379 = vmatprep.subr.mxu0 0.0
    %1380 = vmatpush1.msra.mxu0 %v1343
    %1381 = vmatprep.subr.mxu0 0.0
    %1382 = vmatpush1.msra.mxu0 %v1344
    %1383 = vmatprep.subr.mxu0 0.0
    %1384 = vmatpush1.msra.mxu0 %v1345
    %1385 = vmatprep.subr.mxu0 0.0
    %1386 = vmatpush1.msra.mxu0 0.0
    %1387 = vmatprep.subr.mxu0 0.0
    %1388 = vmatpush1.msra.mxu0 0.0
    %1389 = vmatprep.subr.mxu0 0.0
    %1390 = vmatpush1.msra.mxu0 0.0
    %1391 = vmatprep.subr.mxu0 0.0
    %1392 = vmatpush1.msra.mxu0 0.0
    %1393 = vmatprep.subr.mxu0 0.0
    %1394 = vmatpush1.msra.mxu0 0.0
    %1395 = vmatprep.subr.mxu0 0.0
    %1396 = vmatpush1.msra.mxu0 0.0
    %1397 = vmatprep.subr.mxu0 0.0
    %1398 = vmatpush1.msra.mxu0 0.0
    %1399 = vmatprep.subr.mxu0 0.0
    %1400 = vmatpush1.msra.mxu0 0.0
    %1401 = vmatprep.subr.mxu0 0.0
    %1402 = vmatpush1.msra.mxu0 0.0
    %1403 = vmatprep.subr.mxu0 0.0
    %1404 = vmatpush1.msra.mxu0 0.0
    %1405 = vmatprep.subr.mxu0 0.0
    %1406 = vmatpush1.msra.mxu0 0.0
    %1407 = vmatprep.subr.mxu0 0.0
    %1408 = vmatpush1.msra.mxu0 0.0
    %1409 = vmatprep.subr.mxu0 0.0
    %1410 = vmatpush1.msra.mxu0 0.0
    %1411 = vmatprep.subr.mxu0 0.0
    %1412 = vmatpush1.msra.mxu0 0.0
    %1413 = vmatprep.subr.mxu0 0.0
    %1414 = vmatpush1.msra.mxu0 0.0
    %1415 = vmatprep.subr.mxu0 0.0
    %1416 = vmatpush1.msra.mxu0 0.0
    %1417 = vmatprep.mubr.f32.mxu0 0.0
    %1418 = vmatmul.mubr.f32.gmra.mrb[0].mxu0 %v1327
    %v1419 = vpop.f32.mrb[0].mxu0
    %v1420 = vadd.f32 %v1351, %v1419
    %v1421 = vpop.f32.mrb[0].mxu0
    %1422 = vdwg.mxu0
    %1423 = vst [vmem:[%s8] sm:$0xff] %v1420
    // Predicated region
    $region38: #{lstm_model_forward.1} parent=1 // pred_check
      _
    $region39: #{lstm_model_forward.1} parent=1 // pred_check_branch
      %1425 = sbr.rel (0) target = $region41
    $region40: #{lstm_model_forward.1} parent=1 // pred_region
      _
    $region41: #{lstm_model_forward.1} parent=1 // pred_fallthru
      _
    // Predicated region
    $region42: #{lstm_model_forward.1} parent=1 // pred_check
      _
    $region43: #{lstm_model_forward.1} parent=1 // pred_check_branch
      %1427 = sbr.rel (0) target = $region45
    $region44: #{lstm_model_forward.1} parent=1 // pred_region
      _
    $region45: #{lstm_model_forward.1} parent=1 // pred_fallthru
      _
    // Predicated region
    $region46: #{lstm_model_forward.1} parent=1 // pred_check
      _
    $region47: #{lstm_model_forward.1} parent=1 // pred_check_branch
      %1429 = sbr.rel (0) target = $region49
    $region48: #{lstm_model_forward.1} parent=1 // pred_region
      _
    $region49: #{lstm_model_forward.1} parent=1 // pred_fallthru
      _
    // Predicated region
    $region50: #{lstm_model_forward.1} parent=1 // pred_check
      _
    $region51: #{lstm_model_forward.1} parent=1 // pred_check_branch
      %1431 = sbr.rel (0) target = $region53
    $region52: #{lstm_model_forward.1} parent=1 // pred_region
      _
    $region53: #{lstm_model_forward.1} parent=1 // pred_fallthru
      _
    // Predicated region
    $region54: #{lstm_model_forward.1} parent=1 // pred_check
      _
    $region55: #{lstm_model_forward.1} parent=1 // pred_check_branch
      %1433 = sbr.rel (0) target = $region57
    $region56: #{lstm_model_forward.1} parent=1 // pred_region
      _
    $region57: #{lstm_model_forward.1} parent=1 // pred_fallthru
      _
    // Predicated region
    $region58: #{lstm_model_forward.1} parent=1 // pred_check
      _
    $region59: #{lstm_model_forward.1} parent=1 // pred_check_branch
      %1435 = sbr.rel (0) target = $region61
    $region60: #{lstm_model_forward.1} parent=1 // pred_region
      _
    $region61: #{lstm_model_forward.1} parent=1 // pred_fallthru
      _
    %1436 = vsyncpa [#allocation4], 1

</llo_original>
